<compile_context>
chip_gen: v6e
topology: v6e:2x2x1
jax: 0.10.0
libtpu: 0.0.40
codegen_flags: <defaults>
</compile_context>

<pallas_src>
import functools

import numpy as np

import jax
import jax.numpy as jnp
from jax.experimental import pallas as pl
from jax.experimental.pallas import tpu as pltpu


def _conv_stats_kernel(xm_ref, xh_ref, w_ref, y_ref, ssum_ref, ssq_ref,
                       xcat_ref, *, K, stride, TR, DH, W_out, Cp):
    """Conv (as K*K shifted matmuls) + streaming instance-norm stats.

    xm_ref  : (PH, TR, Wq, Cin)  bf16  main phase-decomposed row tile
    xh_ref  : (PH, DH, Wq, Cin)  bf16  halo rows below the tile
    w_ref   : (K*K, Cin, Cp)     bf16  conv weights (channel padded)
    y_ref   : (1, TP, Cp)        bf16  conv output tile (TP = TR*W_out)
    ssum_ref: (1, 1, Cp)         f32   per-channel running sum   (accumulator)
    ssq_ref : (1, 1, Cp)         f32   per-channel running sumsq (accumulator)
    xcat_ref: (PH, TR+DH, Wq, Cin) bf16 VMEM scratch (tile + halo slab)
    """
    r = pl.program_id(1)
    cin = xm_ref.shape[-1]
    TP = TR * W_out

    # Assemble the row slab (main rows + halo rows) in VMEM scratch so every
    # (kh, kw) window below is a purely static slice.
    xcat_ref[:, 0:TR] = xm_ref[...]
    xcat_ref[:, TR:TR + DH] = xh_ref[...]

    acc = jnp.zeros((TP, Cp), jnp.float32)
    for kh in range(K):                         # static unroll (LLO visibility)
        dh, ph = kh // stride, kh % stride
        for kw in range(K):
            dw, pw = kw // stride, kw % stride
            p = ph * stride + pw
            xs = xcat_ref[p, dh:dh + TR, dw:dw + W_out, :]      # (TR, W_out, Cin)
            acc = acc + jnp.dot(xs.reshape(TP, cin), w_ref[kh * K + kw],
                                preferred_element_type=jnp.float32)

    # Conv output tile (bf16 intermediate; stats taken from the f32 accumulator
    # so the normalization statistics do not suffer bf16 rounding twice).
    y_ref[0] = acc.astype(y_ref.dtype)

    # Streaming per-channel stats across the row-tile (grid axis 1) iterations.
    @pl.when(r == 0)
    def _():
        ssum_ref[...] = jnp.zeros_like(ssum_ref)
        ssq_ref[...] = jnp.zeros_like(ssq_ref)

    ssum_ref[0] += jnp.sum(acc, axis=0, keepdims=True)
    ssq_ref[0] += jnp.sum(acc * acc, axis=0, keepdims=True)


def _norm_relu_kernel(y_ref, ssum_ref, ssq_ref, o_ref, *, inv_p, eps):
    """InstanceNorm (from precomputed sum/sumsq) + ReLU on one row tile."""
    mean = ssum_ref[0] * inv_p                                   # (1, Cp) f32
    var = jnp.maximum(ssq_ref[0] * inv_p - mean * mean, 0.0)     # clamp >= 0
    scale = jax.lax.rsqrt(var + eps)                             # EUP op, ~free
    y = y_ref[0].astype(jnp.float32)                             # (TP, Cp)
    o_ref[0] = jnp.maximum((y - mean) * scale, 0.0).astype(o_ref.dtype)


def _pick_row_tile(H_out, W_out, target_pixels):
    """Largest divisor of H_out whose tile is a legal bf16 block (TP % 16 == 0)
    and not larger than ~target_pixels output pixels."""
    cap = max(1, target_pixels // max(W_out, 1))
    for tr in range(min(cap, H_out), 0, -1):
        if H_out % tr == 0 and (tr * W_out) % 16 == 0:
            return tr
    return H_out                    # full-P block: always a legal block shape


def sampler_forward(x_nchw, weight, bias, *, stride, row_tile=None):
    """Forward pass of Sampler: Conv2d(pad=K//2) -> InstanceNorm2d -> ReLU.

    x_nchw : (N, Cin, H, W) float32
    weight : (Cout, Cin, K, K) float32 (PyTorch Conv2d layout)
    bias   : (Cout,) float32 (unused: exactly cancelled by InstanceNorm)
    Returns (N, Cout, H_out, W_out) float32.
    """
    del bias  # cancelled by the per-channel mean subtraction (affine=False IN)

    N, Cin, H, W = x_nchw.shape
    Cout, Cin_w, K, K2 = weight.shape
    assert Cin_w == Cin and K == K2
    s = int(stride)
    pad = K // 2
    H_out = (H + 2 * pad - K) // s + 1
    W_out = (W + 2 * pad - K) // s + 1
    P = H_out * W_out

    # Stride-phase geometry.
    d_max = (K - 1) // s            # max unit-stride shift inside a phase plane
    DH = max(d_max, 1)              # halo rows carried per tile (>=1 for shape sanity)
    Hq = H_out + d_max              # phase-plane rows
    Wq = W_out + d_max              # phase-plane cols
    PH = s * s                      # number of stride phases

    # Lane-dense channel padding (no-op for realistic Cout >= 128).
    Cp = ((Cout + 127) // 128) * 128

    # Row-tile (P-tile) selection: TR output rows per grid step.
    TR = _pick_row_tile(H_out, W_out,
                        row_tile * W_out if row_tile is not None else 2048)
    num_r = H_out // TR
    TP = TR * W_out

    bf16 = jnp.bfloat16

    # ---- JAX-side layout plumbing (pure data movement, ~1x the activation) ----
    # NCHW -> NHWC, zero-pad to exactly (Hq*s, Wq*s) spatial canvas.
    x_nhwc = jnp.transpose(x_nchw, (0, 2, 3, 1)).astype(bf16)
    Hc, Wc = Hq * s, Wq * s
    h_take = min(H, Hc - pad)       # rows beyond this are never read by the conv
    w_take = min(W, Wc - pad)
    canvas = jnp.zeros((N, Hc, Wc, Cin), bf16)
    canvas = canvas.at[:, pad:pad + h_take, pad:pad + w_take, :].set(
        x_nhwc[:, :h_take, :w_take, :])

    # Stride-phase decomposition:
    #   x_main[n*PH + ph*s + pw, hq, wq, c] = canvas[n, hq*s+ph, wq*s+pw, c]
    x_main = (canvas[:, :H_out * s]
              .reshape(N, H_out, s, Wq, s, Cin)
              .transpose(0, 2, 4, 1, 3, 5)
              .reshape(N * PH, H_out, Wq, Cin))

    # Halo rows: for row tile r we additionally need phase rows
    # [(r+1)*TR, (r+1)*TR + d_max) — gather them into a tiny side tensor.
    hq_idx = np.minimum(
        (np.arange(num_r)[:, None] + 1) * TR + np.arange(DH)[None, :], Hq - 1
    ).reshape(-1)                                                 # (num_r*DH,)
    canvas_rows = (hq_idx[:, None] * s + np.arange(s)[None, :]).reshape(-1)
    x_halo = (canvas[:, canvas_rows]
              .reshape(N, num_r * DH, s, Wq, s, Cin)
              .transpose(0, 2, 4, 1, 3, 5)
              .reshape(N * PH, num_r * DH, Wq, Cin))

    # Weight: (Cout, Cin, K, K) -> (K*K, Cin, Cp) bf16, (kh, kw) major order.
    w_kkio = jnp.transpose(weight, (2, 3, 1, 0)).reshape(K * K, Cin, Cout)
    w_p = jnp.zeros((K * K, Cin, Cp), bf16).at[:, :, :Cout].set(
        w_kkio.astype(bf16))

    vmem_limit = 32 * 1024 * 1024   # >= default scoped limit on all chips

    # ---- Pass 1: conv + streaming stats (grid = (N, row-tiles)) ----
    kern1 = functools.partial(_conv_stats_kernel, K=K, stride=s, TR=TR, DH=DH,
                              W_out=W_out, Cp=Cp)
    y, ssum, ssq = pl.pallas_call(
        kern1,
        grid=(N, num_r),
        in_specs=[
            pl.BlockSpec((PH, TR, Wq, Cin), lambda n, r: (n, r, 0, 0)),
            pl.BlockSpec((PH, DH, Wq, Cin), lambda n, r: (n, r, 0, 0)),
            pl.BlockSpec((K * K, Cin, Cp), lambda n, r: (0, 0, 0)),
        ],
        out_specs=[
            pl.BlockSpec((1, TP, Cp), lambda n, r: (n, r, 0)),
            pl.BlockSpec((1, 1, Cp), lambda n, r: (n, 0, 0)),
            pl.BlockSpec((1, 1, Cp), lambda n, r: (n, 0, 0)),
        ],
        out_shape=[
            jax.ShapeDtypeStruct((N, P, Cp), bf16),
            jax.ShapeDtypeStruct((N, 1, Cp), jnp.float32),
            jax.ShapeDtypeStruct((N, 1, Cp), jnp.float32),
        ],
        scratch_shapes=[pltpu.VMEM((PH, TR + DH, Wq, Cin), bf16)],
        compiler_params=pltpu.CompilerParams(
            dimension_semantics=("parallel", "arbitrary"),
            vmem_limit_bytes=vmem_limit,
        ),
    )(x_main, x_halo, w_p)

    # ---- Pass 2: normalize + ReLU (fully parallel grid) ----
    kern2 = functools.partial(_norm_relu_kernel, inv_p=1.0 / float(P), eps=1e-5)
    out_p = pl.pallas_call(
        kern2,
        grid=(N, num_r),
        in_specs=[
            pl.BlockSpec((1, TP, Cp), lambda n, r: (n, r, 0)),
            pl.BlockSpec((1, 1, Cp), lambda n, r: (n, 0, 0)),
            pl.BlockSpec((1, 1, Cp), lambda n, r: (n, 0, 0)),
        ],
        out_specs=pl.BlockSpec((1, TP, Cp), lambda n, r: (n, r, 0)),
        out_shape=jax.ShapeDtypeStruct((N, P, Cp), jnp.float32),
        compiler_params=pltpu.CompilerParams(
            dimension_semantics=("parallel", "parallel"),
            vmem_limit_bytes=vmem_limit,
        ),
    )(y, ssum, ssq)

    # TODO(synk): Dropout branch (dropout_rate != 0) not implemented; the
    # module default is dropout_rate=0 (identity, and a no-op in eval mode).

    out = out_p[:, :, :Cout].reshape(N, H_out, W_out, Cout)
    return jnp.transpose(out, (0, 3, 1, 2))   # back to NCHW (PyTorch contract)


def _reference(x, weight, bias, *, stride):
    """Pure-JAX reference (bf16-rounded inputs, f32 math) for validation."""
    K = weight.shape[-1]
    pad = K // 2
    xb = x.astype(jnp.bfloat16).astype(jnp.float32)
    wb = weight.astype(jnp.bfloat16).astype(jnp.float32)
    y = jax.lax.conv_general_dilated(
        xb, wb, window_strides=(stride, stride),
        padding=[(pad, pad), (pad, pad)],
        dimension_numbers=("NCHW", "OIHW", "NCHW"))
    y = y + bias[None, :, None, None]
    mean = jnp.mean(y, axis=(2, 3), keepdims=True)
    var = jnp.mean((y - mean) ** 2, axis=(2, 3), keepdims=True)
    return jnp.maximum((y - mean) * jax.lax.rsqrt(var + 1e-5), 0.0)


if __name__ == "__main__":
    # Small shapes consistent with the module's forward (NCHW input).
    N, Cin, H, W = 2, 4, 16, 16
    Cout, K, stride = 8, 3, 2

    key = jax.random.PRNGKey(0)
    kx, kw, kb = jax.random.split(key, 3)
    x = jax.random.normal(kx, (N, Cin, H, W), dtype=jnp.float32)
    weight = jax.random.normal(kw, (Cout, Cin, K, K), dtype=jnp.float32) * 0.1
    bias = jax.random.normal(kb, (Cout,), dtype=jnp.float32) * 0.01

    # row_tile=4 -> 2 row tiles per image, exercising the streaming-stats path.
    fwd = jax.jit(functools.partial(sampler_forward, stride=stride, row_tile=4))
    out = fwd(x, weight, bias)
    jax.block_until_ready(out)

    ref = _reference(x, weight, bias, stride=stride)
    err = float(jnp.max(jnp.abs(out - ref)))

    assert out.shape == (N, Cout, H // stride, W // stride), out.shape
    assert bool(jnp.all(out >= 0.0))          # ReLU output is non-negative
    assert err < 5e-2, f"max abs error vs reference: {err}"
    print("KERNEL_OK")
</pallas_src>

<mosaic_0001>
module attributes {stable_mosaic.version = 11 : i64} {
  func.func @_norm_relu_kernel(%arg0: i32, %arg1: i32, %arg2: memref<1x32x128xbf16, #tpu.memory_space<vmem>>, %arg3: memref<1x1x128xf32, #tpu.memory_space<vmem>>, %arg4: memref<1x1x128xf32, #tpu.memory_space<vmem>>, %arg5: memref<1x32x128xf32, #tpu.memory_space<vmem>>) attributes {dimension_semantics = [#tpu.dimension_semantics<parallel>, #tpu.dimension_semantics<parallel>], iteration_bounds = array<i64: 2, 2>, scalar_prefetch = 0 : i64, scratch_operands = 0 : i64, tpu.core_type = #tpu.core_type<tc>, window_params = [{transform_indices = @transform_0, window_bounds = array<i64: 1, 32, 128>}, {transform_indices = @transform_1, window_bounds = array<i64: 1, 1, 128>}, {transform_indices = @transform_2, window_bounds = array<i64: 1, 1, 128>}, {transform_indices = @transform_3, window_bounds = array<i64: 1, 32, 128>}]} {
    %c0 = arith.constant 0 : index
    %c0_0 = arith.constant 0 : index
    %c0_1 = arith.constant 0 : index
    %0 = vector.load %arg3[%c0, %c0_0, %c0_1] : memref<1x1x128xf32, #tpu.memory_space<vmem>>, vector<1x1x128xf32>
    %1 = vector.shape_cast %0 : vector<1x1x128xf32> to vector<1x128xf32>
    %cst = arith.constant 1.562500e-02 : f32
    %2 = vector.broadcast %cst : f32 to vector<1x128xf32>
    %3 = arith.mulf %1, %2 : vector<1x128xf32>
    %c0_2 = arith.constant 0 : index
    %c0_3 = arith.constant 0 : index
    %c0_4 = arith.constant 0 : index
    %4 = vector.load %arg4[%c0_2, %c0_3, %c0_4] : memref<1x1x128xf32, #tpu.memory_space<vmem>>, vector<1x1x128xf32>
    %5 = vector.shape_cast %4 : vector<1x1x128xf32> to vector<1x128xf32>
    %cst_5 = arith.constant 1.562500e-02 : f32
    %6 = vector.broadcast %cst_5 : f32 to vector<1x128xf32>
    %7 = arith.mulf %5, %6 : vector<1x128xf32>
    %8 = arith.mulf %3, %3 : vector<1x128xf32>
    %9 = arith.subf %7, %8 : vector<1x128xf32>
    %cst_6 = arith.constant 0.000000e+00 : f32
    %10 = vector.broadcast %cst_6 : f32 to vector<1x128xf32>
    %11 = arith.maximumf %9, %10 : vector<1x128xf32>
    %cst_7 = arith.constant 9.99999974E-6 : f32
    %12 = vector.broadcast %cst_7 : f32 to vector<1x128xf32>
    %13 = arith.addf %11, %12 : vector<1x128xf32>
    %14 = math.rsqrt %13 : vector<1x128xf32>
    %c0_8 = arith.constant 0 : index
    %c0_9 = arith.constant 0 : index
    %c0_10 = arith.constant 0 : index
    %15 = vector.load %arg2[%c0_8, %c0_9, %c0_10] : memref<1x32x128xbf16, #tpu.memory_space<vmem>>, vector<1x32x128xbf16>
    %16 = vector.shape_cast %15 : vector<1x32x128xbf16> to vector<32x128xbf16>
    %17 = arith.extf %16 : vector<32x128xbf16> to vector<32x128xf32>
    %18 = vector.broadcast %3 : vector<1x128xf32> to vector<32x128xf32>
    %19 = arith.subf %17, %18 : vector<32x128xf32>
    %20 = vector.broadcast %14 : vector<1x128xf32> to vector<32x128xf32>
    %21 = arith.mulf %19, %20 : vector<32x128xf32>
    %cst_11 = arith.constant 0.000000e+00 : f32
    %22 = vector.broadcast %cst_11 : f32 to vector<32x128xf32>
    %23 = arith.maximumf %21, %22 : vector<32x128xf32>
    %c0_12 = arith.constant 0 : index
    %c0_13 = arith.constant 0 : index
    %c0_14 = arith.constant 0 : index
    %24 = vector.load %arg5[%c0_12, %c0_13, %c0_14] : memref<1x32x128xf32, #tpu.memory_space<vmem>>, vector<1x32x128xf32>
    %25 = vector.shape_cast %24 : vector<1x32x128xf32> to vector<32x128xf32>
    %26 = vector.shape_cast %23 : vector<32x128xf32> to vector<1x32x128xf32>
    tpu.vector_store %arg5[%c0_12, %c0_13, %c0_14], %26 {strides = array<i32>} : memref<1x32x128xf32, #tpu.memory_space<vmem>>, vector<1x32x128xf32>,
    return
  }
  func.func @transform_0(%arg0: i32, %arg1: i32) -> (i32, i32, i32) {
    %c0_i32 = arith.constant 0 : i32
    %c0_i32_0 = arith.constant 0 : i32
    return %arg0, %arg1, %c0_i32 : i32, i32, i32
  }
  func.func @transform_1(%arg0: i32, %arg1: i32) -> (i32, i32, i32) {
    %c0_i32 = arith.constant 0 : i32
    %c0_i32_0 = arith.constant 0 : i32
    %c0_i32_1 = arith.constant 0 : i32
    return %arg0, %c0_i32, %c0_i32_0 : i32, i32, i32
  }
  func.func @transform_2(%arg0: i32, %arg1: i32) -> (i32, i32, i32) {
    %c0_i32 = arith.constant 0 : i32
    %c0_i32_0 = arith.constant 0 : i32
    %c0_i32_1 = arith.constant 0 : i32
    return %arg0, %c0_i32, %c0_i32_0 : i32, i32, i32
  }
  func.func @transform_3(%arg0: i32, %arg1: i32) -> (i32, i32, i32) {
    %c0_i32 = arith.constant 0 : i32
    %c0_i32_0 = arith.constant 0 : i32
    return %arg0, %arg1, %c0_i32 : i32, i32, i32
  }
}

module attributes {stable_mosaic.version = 11 : i64} {
  func.func @_conv_stats_kernel(%arg0: i32, %arg1: i32, %arg2: memref<4x4x9x4xbf16, #tpu.memory_space<vmem>>, %arg3: memref<4x1x9x4xbf16, #tpu.memory_space<vmem>>, %arg4: memref<9x4x128xbf16, #tpu.memory_space<vmem>>, %arg5: memref<1x32x128xbf16, #tpu.memory_space<vmem>>, %arg6: memref<1x1x128xf32, #tpu.memory_space<vmem>>, %arg7: memref<1x1x128xf32, #tpu.memory_space<vmem>>, %arg8: memref<4x5x9x4xbf16, #tpu.memory_space<vmem>>) attributes {dimension_semantics = [#tpu.dimension_semantics<parallel>, #tpu.dimension_semantics<arbitrary>], iteration_bounds = array<i64: 2, 2>, scalar_prefetch = 0 : i64, scratch_operands = 1 : i64, tpu.core_type = #tpu.core_type<tc>, window_params = [{transform_indices = @transform_0, window_bounds = array<i64: 4, 4, 9, 4>}, {transform_indices = @transform_1, window_bounds = array<i64: 4, 1, 9, 4>}, {pipeline_mode = #tpu.pipeline_mode<synchronous>, transform_indices = @transform_2, window_bounds = array<i64: 9, 4, 128>}, {transform_indices = @transform_3, window_bounds = array<i64: 1, 32, 128>}, {transform_indices = @transform_4, window_bounds = array<i64: 1, 1, 128>}, {transform_indices = @transform_5, window_bounds = array<i64: 1, 1, 128>}]} {
    %c0 = arith.constant 0 : index
    %c0_0 = arith.constant 0 : index
    %c0_1 = arith.constant 0 : index
    %c0_2 = arith.constant 0 : index
    %0 = vector.load %arg2[%c0, %c0_0, %c0_1, %c0_2] : memref<4x4x9x4xbf16, #tpu.memory_space<vmem>>, vector<4x4x9x4xbf16>
    %c0_3 = arith.constant 0 : index
    %c0_4 = arith.constant 0 : index
    %c0_5 = arith.constant 0 : index
    %c0_6 = arith.constant 0 : index
    %1 = vector.load %arg8[%c0_3, %c0_4, %c0_5, %c0_6] : memref<4x5x9x4xbf16, #tpu.memory_space<vmem>>, vector<4x4x9x4xbf16>
    tpu.vector_store %arg8[%c0_3, %c0_4, %c0_5, %c0_6], %0 {strides = array<i32>} : memref<4x5x9x4xbf16, #tpu.memory_space<vmem>>, vector<4x4x9x4xbf16>,
    %c0_7 = arith.constant 0 : index
    %c0_8 = arith.constant 0 : index
    %c0_9 = arith.constant 0 : index
    %c0_10 = arith.constant 0 : index
    %2 = vector.load %arg3[%c0_7, %c0_8, %c0_9, %c0_10] : memref<4x1x9x4xbf16, #tpu.memory_space<vmem>>, vector<4x1x9x4xbf16>
    %c0_11 = arith.constant 0 : index
    %c4 = arith.constant 4 : index
    %c0_12 = arith.constant 0 : index
    %c0_13 = arith.constant 0 : index
    %3 = vector.load %arg8[%c0_11, %c4, %c0_12, %c0_13] : memref<4x5x9x4xbf16, #tpu.memory_space<vmem>>, vector<4x1x9x4xbf16>
    tpu.vector_store %arg8[%c0_11, %c4, %c0_12, %c0_13], %2 {strides = array<i32>} : memref<4x5x9x4xbf16, #tpu.memory_space<vmem>>, vector<4x1x9x4xbf16>,
    %cst = arith.constant 0.000000e+00 : f32
    %4 = vector.broadcast %cst : f32 to vector<32x128xf32>
    %c0_14 = arith.constant 0 : index
    %c0_15 = arith.constant 0 : index
    %c0_16 = arith.constant 0 : index
    %c0_17 = arith.constant 0 : index
    %5 = vector.load %arg8[%c0_14, %c0_15, %c0_16, %c0_17] : memref<4x5x9x4xbf16, #tpu.memory_space<vmem>>, vector<1x4x8x4xbf16>
    %6 = vector.shape_cast %5 : vector<1x4x8x4xbf16> to vector<4x8x4xbf16>
    %7 = vector.shape_cast %6 : vector<4x8x4xbf16> to vector<32x4xbf16>
    %c0_18 = arith.constant 0 : index
    %c0_19 = arith.constant 0 : index
    %c0_20 = arith.constant 0 : index
    %8 = vector.load %arg4[%c0_18, %c0_19, %c0_20] : memref<9x4x128xbf16, #tpu.memory_space<vmem>>, vector<1x4x128xbf16>
    %9 = vector.shape_cast %8 : vector<1x4x128xbf16> to vector<4x128xbf16>
    %cst_21 = arith.constant dense<0.000000e+00> : vector<32x128xf32>
    %10 = tpu.matmul %7, %9, %cst_21 {dimension_numbers = #tpu.dot_dimension_numbers<[1], [0], [0], [1], [0, 0, 1, 1], [], []>} : vector<32x4xbf16>, vector<4x128xbf16>, vector<32x128xf32> -> vector<32x128xf32>
    %11 = arith.addf %4, %10 : vector<32x128xf32>
    %c1 = arith.constant 1 : index
    %c0_22 = arith.constant 0 : index
    %c0_23 = arith.constant 0 : index
    %c0_24 = arith.constant 0 : index
    %12 = vector.load %arg8[%c1, %c0_22, %c0_23, %c0_24] : memref<4x5x9x4xbf16, #tpu.memory_space<vmem>>, vector<1x4x8x4xbf16>
    %13 = vector.shape_cast %12 : vector<1x4x8x4xbf16> to vector<4x8x4xbf16>
    %14 = vector.shape_cast %13 : vector<4x8x4xbf16> to vector<32x4xbf16>
    %c1_25 = arith.constant 1 : index
    %c0_26 = arith.constant 0 : index
    %c0_27 = arith.constant 0 : index
    %15 = vector.load %arg4[%c1_25, %c0_26, %c0_27] : memref<9x4x128xbf16, #tpu.memory_space<vmem>>, vector<1x4x128xbf16>
    %16 = vector.shape_cast %15 : vector<1x4x128xbf16> to vector<4x128xbf16>
    %cst_28 = arith.constant dense<0.000000e+00> : vector<32x128xf32>
    %17 = tpu.matmul %14, %16, %cst_28 {dimension_numbers = #tpu.dot_dimension_numbers<[1], [0], [0], [1], [0, 0, 1, 1], [], []>} : vector<32x4xbf16>, vector<4x128xbf16>, vector<32x128xf32> -> vector<32x128xf32>
    %18 = arith.addf %11, %17 : vector<32x128xf32>
    %c0_29 = arith.constant 0 : index
    %c0_30 = arith.constant 0 : index
    %c1_31 = arith.constant 1 : index
    %c0_32 = arith.constant 0 : index
    %19 = vector.load %arg8[%c0_29, %c0_30, %c1_31, %c0_32] : memref<4x5x9x4xbf16, #tpu.memory_space<vmem>>, vector<1x4x8x4xbf16>
    %20 = vector.shape_cast %19 : vector<1x4x8x4xbf16> to vector<4x8x4xbf16>
    %21 = vector.shape_cast %20 : vector<4x8x4xbf16> to vector<32x4xbf16>
    %c2 = arith.constant 2 : index
    %c0_33 = arith.constant 0 : index
    %c0_34 = arith.constant 0 : index
    %22 = vector.load %arg4[%c2, %c0_33, %c0_34] : memref<9x4x128xbf16, #tpu.memory_space<vmem>>, vector<1x4x128xbf16>
    %23 = vector.shape_cast %22 : vector<1x4x128xbf16> to vector<4x128xbf16>
    %cst_35 = arith.constant dense<0.000000e+00> : vector<32x128xf32>
    %24 = tpu.matmul %21, %23, %cst_35 {dimension_numbers = #tpu.dot_dimension_numbers<[1], [0], [0], [1], [0, 0, 1, 1], [], []>} : vector<32x4xbf16>, vector<4x128xbf16>, vector<32x128xf32> -> vector<32x128xf32>
    %25 = arith.addf %18, %24 : vector<32x128xf32>
    %c2_36 = arith.constant 2 : index
    %c0_37 = arith.constant 0 : index
    %c0_38 = arith.constant 0 : index
    %c0_39 = arith.constant 0 : index
    %26 = vector.load %arg8[%c2_36, %c0_37, %c0_38, %c0_39] : memref<4x5x9x4xbf16, #tpu.memory_space<vmem>>, vector<1x4x8x4xbf16>
    %27 = vector.shape_cast %26 : vector<1x4x8x4xbf16> to vector<4x8x4xbf16>
    %28 = vector.shape_cast %27 : vector<4x8x4xbf16> to vector<32x4xbf16>
    %c3 = arith.constant 3 : index
    %c0_40 = arith.constant 0 : index
    %c0_41 = arith.constant 0 : index
    %29 = vector.load %arg4[%c3, %c0_40, %c0_41] : memref<9x4x128xbf16, #tpu.memory_space<vmem>>, vector<1x4x128xbf16>
    %30 = vector.shape_cast %29 : vector<1x4x128xbf16> to vector<4x128xbf16>
    %cst_42 = arith.constant dense<0.000000e+00> : vector<32x128xf32>
    %31 = tpu.matmul %28, %30, %cst_42 {dimension_numbers = #tpu.dot_dimension_numbers<[1], [0], [0], [1], [0, 0, 1, 1], [], []>} : vector<32x4xbf16>, vector<4x128xbf16>, vector<32x128xf32> -> vector<32x128xf32>
    %32 = arith.addf %25, %31 : vector<32x128xf32>
    %c3_43 = arith.constant 3 : index
    %c0_44 = arith.constant 0 : index
    %c0_45 = arith.constant 0 : index
    %c0_46 = arith.constant 0 : index
    %33 = vector.load %arg8[%c3_43, %c0_44, %c0_45, %c0_46] : memref<4x5x9x4xbf16, #tpu.memory_space<vmem>>, vector<1x4x8x4xbf16>
    %34 = vector.shape_cast %33 : vector<1x4x8x4xbf16> to vector<4x8x4xbf16>
    %35 = vector.shape_cast %34 : vector<4x8x4xbf16> to vector<32x4xbf16>
    %c4_47 = arith.constant 4 : index
    %c0_48 = arith.constant 0 : index
    %c0_49 = arith.constant 0 : index
    %36 = vector.load %arg4[%c4_47, %c0_48, %c0_49] : memref<9x4x128xbf16, #tpu.memory_space<vmem>>, vector<1x4x128xbf16>
    %37 = vector.shape_cast %36 : vector<1x4x128xbf16> to vector<4x128xbf16>
    %cst_50 = arith.constant dense<0.000000e+00> : vector<32x128xf32>
    %38 = tpu.matmul %35, %37, %cst_50 {dimension_numbers = #tpu.dot_dimension_numbers<[1], [0], [0], [1], [0, 0, 1, 1], [], []>} : vector<32x4xbf16>, vector<4x128xbf16>, vector<32x128xf32> -> vector<32x128xf32>
    %39 = arith.addf %32, %38 : vector<32x128xf32>
    %c2_51 = arith.constant 2 : index
    %c0_52 = arith.constant 0 : index
    %c1_53 = arith.constant 1 : index
    %c0_54 = arith.constant 0 : index
    %40 = vector.load %arg8[%c2_51, %c0_52, %c1_53, %c0_54] : memref<4x5x9x4xbf16, #tpu.memory_space<vmem>>, vector<1x4x8x4xbf16>
    %41 = vector.shape_cast %40 : vector<1x4x8x4xbf16> to vector<4x8x4xbf16>
    %42 = vector.shape_cast %41 : vector<4x8x4xbf16> to vector<32x4xbf16>
    %c5 = arith.constant 5 : index
    %c0_55 = arith.constant 0 : index
    %c0_56 = arith.constant 0 : index
    %43 = vector.load %arg4[%c5, %c0_55, %c0_56] : memref<9x4x128xbf16, #tpu.memory_space<vmem>>, vector<1x4x128xbf16>
    %44 = vector.shape_cast %43 : vector<1x4x128xbf16> to vector<4x128xbf16>
    %cst_57 = arith.constant dense<0.000000e+00> : vector<32x128xf32>
    %45 = tpu.matmul %42, %44, %cst_57 {dimension_numbers = #tpu.dot_dimension_numbers<[1], [0], [0], [1], [0, 0, 1, 1], [], []>} : vector<32x4xbf16>, vector<4x128xbf16>, vector<32x128xf32> -> vector<32x128xf32>
    %46 = arith.addf %39, %45 : vector<32x128xf32>
    %c0_58 = arith.constant 0 : index
    %c1_59 = arith.constant 1 : index
    %c0_60 = arith.constant 0 : index
    %c0_61 = arith.constant 0 : index
    %47 = vector.load %arg8[%c0_58, %c1_59, %c0_60, %c0_61] : memref<4x5x9x4xbf16, #tpu.memory_space<vmem>>, vector<1x4x8x4xbf16>
    %48 = vector.shape_cast %47 : vector<1x4x8x4xbf16> to vector<4x8x4xbf16>
    %49 = vector.shape_cast %48 : vector<4x8x4xbf16> to vector<32x4xbf16>
    %c6 = arith.constant 6 : index
    %c0_62 = arith.constant 0 : index
    %c0_63 = arith.constant 0 : index
    %50 = vector.load %arg4[%c6, %c0_62, %c0_63] : memref<9x4x128xbf16, #tpu.memory_space<vmem>>, vector<1x4x128xbf16>
    %51 = vector.shape_cast %50 : vector<1x4x128xbf16> to vector<4x128xbf16>
    %cst_64 = arith.constant dense<0.000000e+00> : vector<32x128xf32>
    %52 = tpu.matmul %49, %51, %cst_64 {dimension_numbers = #tpu.dot_dimension_numbers<[1], [0], [0], [1], [0, 0, 1, 1], [], []>} : vector<32x4xbf16>, vector<4x128xbf16>, vector<32x128xf32> -> vector<32x128xf32>
    %53 = arith.addf %46, %52 : vector<32x128xf32>
    %c1_65 = arith.constant 1 : index
    %c1_66 = arith.constant 1 : index
    %c0_67 = arith.constant 0 : index
    %c0_68 = arith.constant 0 : index
    %54 = vector.load %arg8[%c1_65, %c1_66, %c0_67, %c0_68] : memref<4x5x9x4xbf16, #tpu.memory_space<vmem>>, vector<1x4x8x4xbf16>
    %55 = vector.shape_cast %54 : vector<1x4x8x4xbf16> to vector<4x8x4xbf16>
    %56 = vector.shape_cast %55 : vector<4x8x4xbf16> to vector<32x4xbf16>
    %c7 = arith.constant 7 : index
    %c0_69 = arith.constant 0 : index
    %c0_70 = arith.constant 0 : index
    %57 = vector.load %arg4[%c7, %c0_69, %c0_70] : memref<9x4x128xbf16, #tpu.memory_space<vmem>>, vector<1x4x128xbf16>
    %58 = vector.shape_cast %57 : vector<1x4x128xbf16> to vector<4x128xbf16>
    %cst_71 = arith.constant dense<0.000000e+00> : vector<32x128xf32>
    %59 = tpu.matmul %56, %58, %cst_71 {dimension_numbers = #tpu.dot_dimension_numbers<[1], [0], [0], [1], [0, 0, 1, 1], [], []>} : vector<32x4xbf16>, vector<4x128xbf16>, vector<32x128xf32> -> vector<32x128xf32>
    %60 = arith.addf %53, %59 : vector<32x128xf32>
    %c0_72 = arith.constant 0 : index
    %c1_73 = arith.constant 1 : index
    %c1_74 = arith.constant 1 : index
    %c0_75 = arith.constant 0 : index
    %61 = vector.load %arg8[%c0_72, %c1_73, %c1_74, %c0_75] : memref<4x5x9x4xbf16, #tpu.memory_space<vmem>>, vector<1x4x8x4xbf16>
    %62 = vector.shape_cast %61 : vector<1x4x8x4xbf16> to vector<4x8x4xbf16>
    %63 = vector.shape_cast %62 : vector<4x8x4xbf16> to vector<32x4xbf16>
    %c8 = arith.constant 8 : index
    %c0_76 = arith.constant 0 : index
    %c0_77 = arith.constant 0 : index
    %64 = vector.load %arg4[%c8, %c0_76, %c0_77] : memref<9x4x128xbf16, #tpu.memory_space<vmem>>, vector<1x4x128xbf16>
    %65 = vector.shape_cast %64 : vector<1x4x128xbf16> to vector<4x128xbf16>
    %cst_78 = arith.constant dense<0.000000e+00> : vector<32x128xf32>
    %66 = tpu.matmul %63, %65, %cst_78 {dimension_numbers = #tpu.dot_dimension_numbers<[1], [0], [0], [1], [0, 0, 1, 1], [], []>} : vector<32x4xbf16>, vector<4x128xbf16>, vector<32x128xf32> -> vector<32x128xf32>
    %67 = arith.addf %60, %66 : vector<32x128xf32>
    %68 = arith.truncf %67 : vector<32x128xf32> to vector<32x128xbf16>
    %c0_79 = arith.constant 0 : index
    %c0_80 = arith.constant 0 : index
    %c0_81 = arith.constant 0 : index
    %69 = vector.load %arg5[%c0_79, %c0_80, %c0_81] : memref<1x32x128xbf16, #tpu.memory_space<vmem>>, vector<1x32x128xbf16>
    %70 = vector.shape_cast %69 : vector<1x32x128xbf16> to vector<32x128xbf16>
    %71 = vector.shape_cast %68 : vector<32x128xbf16> to vector<1x32x128xbf16>
    tpu.vector_store %arg5[%c0_79, %c0_80, %c0_81], %71 {strides = array<i32>} : memref<1x32x128xbf16, #tpu.memory_space<vmem>>, vector<1x32x128xbf16>,
    %c0_i32 = arith.constant 0 : i32
    %72 = arith.cmpi eq, %arg1, %c0_i32 : i32
    %73 = arith.extui %72 : i1 to i32
    %c0_i32_82 = arith.constant 0 : i32
    %74 = arith.cmpi ne, %73, %c0_i32_82 : i32
    scf.if %74 {
      %cst_97 = arith.constant 0.000000e+00 : f32
      %92 = vector.broadcast %cst_97 : f32 to vector<1x1x128xf32>
      %c0_98 = arith.constant 0 : index
      %c0_99 = arith.constant 0 : index
      %c0_100 = arith.constant 0 : index
      %93 = vector.load %arg6[%c0_98, %c0_99, %c0_100] : memref<1x1x128xf32, #tpu.memory_space<vmem>>, vector<1x1x128xf32>
      tpu.vector_store %arg6[%c0_98, %c0_99, %c0_100], %92 {strides = array<i32>} : memref<1x1x128xf32, #tpu.memory_space<vmem>>, vector<1x1x128xf32>,
      %cst_101 = arith.constant 0.000000e+00 : f32
      %94 = vector.broadcast %cst_101 : f32 to vector<1x1x128xf32>
      %c0_102 = arith.constant 0 : index
      %c0_103 = arith.constant 0 : index
      %c0_104 = arith.constant 0 : index
      %95 = vector.load %arg7[%c0_102, %c0_103, %c0_104] : memref<1x1x128xf32, #tpu.memory_space<vmem>>, vector<1x1x128xf32>
      tpu.vector_store %arg7[%c0_102, %c0_103, %c0_104], %94 {strides = array<i32>} : memref<1x1x128xf32, #tpu.memory_space<vmem>>, vector<1x1x128xf32>,
    } else {
    }
    %c0_83 = arith.constant 0 : index
    %c0_84 = arith.constant 0 : index
    %c0_85 = arith.constant 0 : index
    %75 = vector.load %arg6[%c0_83, %c0_84, %c0_85] : memref<1x1x128xf32, #tpu.memory_space<vmem>>, vector<1x1x128xf32>
    %76 = vector.shape_cast %75 : vector<1x1x128xf32> to vector<1x128xf32>
    %cst_86 = arith.constant dense<0.000000e+00> : vector<128xf32>
    %77 = vector.multi_reduction <add>, %67, %cst_86 [0] : vector<32x128xf32> to vector<128xf32>
    %78 = vector.shape_cast %77 : vector<128xf32> to vector<1x128xf32>
    %79 = arith.addf %76, %78 : vector<1x128xf32>
    %c0_87 = arith.constant 0 : index
    %c0_88 = arith.constant 0 : index
    %c0_89 = arith.constant 0 : index
    %80 = vector.load %arg6[%c0_87, %c0_88, %c0_89] : memref<1x1x128xf32, #tpu.memory_space<vmem>>, vector<1x1x128xf32>
    %81 = vector.shape_cast %80 : vector<1x1x128xf32> to vector<1x128xf32>
    %82 = vector.shape_cast %79 : vector<1x128xf32> to vector<1x1x128xf32>
    tpu.vector_store %arg6[%c0_87, %c0_88, %c0_89], %82 {strides = array<i32>} : memref<1x1x128xf32, #tpu.memory_space<vmem>>, vector<1x1x128xf32>,
    %c0_90 = arith.constant 0 : index
    %c0_91 = arith.constant 0 : index
    %c0_92 = arith.constant 0 : index
    %83 = vector.load %arg7[%c0_90, %c0_91, %c0_92] : memref<1x1x128xf32, #tpu.memory_space<vmem>>, vector<1x1x128xf32>
    %84 = vector.shape_cast %83 : vector<1x1x128xf32> to vector<1x128xf32>
    %85 = arith.mulf %67, %67 : vector<32x128xf32>
    %cst_93 = arith.constant dense<0.000000e+00> : vector<128xf32>
    %86 = vector.multi_reduction <add>, %85, %cst_93 [0] : vector<32x128xf32> to vector<128xf32>
    %87 = vector.shape_cast %86 : vector<128xf32> to vector<1x128xf32>
    %88 = arith.addf %84, %87 : vector<1x128xf32>
    %c0_94 = arith.constant 0 : index
    %c0_95 = arith.constant 0 : index
    %c0_96 = arith.constant 0 : index
    %89 = vector.load %arg7[%c0_94, %c0_95, %c0_96] : memref<1x1x128xf32, #tpu.memory_space<vmem>>, vector<1x1x128xf32>
    %90 = vector.shape_cast %89 : vector<1x1x128xf32> to vector<1x128xf32>
    %91 = vector.shape_cast %88 : vector<1x128xf32> to vector<1x1x128xf32>
    tpu.vector_store %arg7[%c0_94, %c0_95, %c0_96], %91 {strides = array<i32>} : memref<1x1x128xf32, #tpu.memory_space<vmem>>, vector<1x1x128xf32>,
    return
  }
  func.func @transform_0(%arg0: i32, %arg1: i32) -> (i32, i32, i32, i32) {
    %c0_i32 = arith.constant 0 : i32
    %c0_i32_0 = arith.constant 0 : i32
    %c0_i32_1 = arith.constant 0 : i32
    return %arg0, %arg1, %c0_i32, %c0_i32_0 : i32, i32, i32, i32
  }
  func.func @transform_1(%arg0: i32, %arg1: i32) -> (i32, i32, i32, i32) {
    %c0_i32 = arith.constant 0 : i32
    %c0_i32_0 = arith.constant 0 : i32
    %c0_i32_1 = arith.constant 0 : i32
    return %arg0, %arg1, %c0_i32, %c0_i32_0 : i32, i32, i32, i32
  }
  func.func @transform_2(%arg0: i32, %arg1: i32) -> (i32, i32, i32) {
    %c0_i32 = arith.constant 0 : i32
    %c0_i32_0 = arith.constant 0 : i32
    %c0_i32_1 = arith.constant 0 : i32
    %c0_i32_2 = arith.constant 0 : i32
    return %c0_i32, %c0_i32_0, %c0_i32_1 : i32, i32, i32
  }
  func.func @transform_3(%arg0: i32, %arg1: i32) -> (i32, i32, i32) {
    %c0_i32 = arith.constant 0 : i32
    %c0_i32_0 = arith.constant 0 : i32
    return %arg0, %arg1, %c0_i32 : i32, i32, i32
  }
  func.func @transform_4(%arg0: i32, %arg1: i32) -> (i32, i32, i32) {
    %c0_i32 = arith.constant 0 : i32
    %c0_i32_0 = arith.constant 0 : i32
    %c0_i32_1 = arith.constant 0 : i32
    return %arg0, %c0_i32, %c0_i32_0 : i32, i32, i32
  }
  func.func @transform_5(%arg0: i32, %arg1: i32) -> (i32, i32, i32) {
    %c0_i32 = arith.constant 0 : i32
    %c0_i32_0 = arith.constant 0 : i32
    %c0_i32_1 = arith.constant 0 : i32
    return %arg0, %c0_i32, %c0_i32_0 : i32, i32, i32
  }
}

</mosaic_0001>

<llo_original>
// kernel: sampler_forward.3
$region0: #{sampler_forward.3}
  #allocation0 [shape = 'u32[]', space=smem, size = 0x4, offset = 0x4, fixed_abs, tag = 'smem constant byte address 0x4 - core index']
  #allocation1 [shape = 'u32[144,128]{1,0:T(1,128)}', space=vmem, size = 0x12000, scoped, tag = 'internal scratch']
  %s0 = inlined_call_operand.vmem [shape: bf16[2,64,128], index: 0, kind: input, shape index: {}]
  %s1 = inlined_call_operand.vmem [shape: f32[2,1,128], index: 1, kind: input, shape index: {}]
  %s2 = inlined_call_operand.vmem [shape: f32[2,1,128], index: 2, kind: input, shape index: {}]
  %s3 = inlined_call_operand.vmem [shape: f32[2,64,128], index: 3, kind: output, shape index: {}]
  %s4 = sld [smem:[#allocation0]]
  $region45: #{sampler_forward.3} parent=0
    _
  %s6 = ssub.s32 1, %s4
  %s7 = scalar_select 0, %s6, %s4
  loop: start=0, step=1, limit=6
  $region2: #{sampler_forward.3} parent=0 // loop_pre_header
    _
  $region3: #{sampler_forward.3} parent=0 // loop_header
    %s9 = sphi 0, %s13
    %p10 = scmp.ge.s32.totalorder %s9, 6
    %s16 = sphi 0, %s28
    %s17 = sphi 0, %s24
    %s18 = sphi 0, %s16
    %s19 = sphi 0, %s17
    %s20 = sphi 0, %s18
    %s21 = sphi 0, %s19
    %s33 = sphi 0, %s35
    %s36 = sphi 0, %s33
    %s37 = sphi 0, %s36
    %s53 = sphi 0, %s37
    %s59 = sphi 0, %s61
    %s62 = sphi 0, %s59
    %s63 = sphi 0, %s62
    %s79 = sphi 0, %s63
    %s85 = sphi 0, %s87
    %s88 = sphi 0, %s85
    %s89 = sphi 0, %s88
    %s105 = sphi 0, %s89
    %s113 = sphi 0, %s115
    %s116 = sphi 0, %s113
    %s117 = sphi 0, %s116
    %s133 = sphi 0, %s117
  $region4: #{sampler_forward.3} parent=0 // loop_header_branch
    %12 = sbr.rel (%p10) target = $region8
  $region5: #{sampler_forward.3} parent=0 // loop_body
    %s14 = ssub.s32 %s9, 1
    %s15 = ssub.s32 %s9, 2
    %s22 = sadd.s32 1, %s17
    %p23 = scmp.ge.s32.totalorder %s22, 2
    %s24 = scalar_select %p23, 0, %s22
    %s25 = sadd.s32 1, %s16
    %s26 = scalar_select %p23, %s25, %s16
    %p27 = scmp.ge.s32.totalorder %s26, 2
    %s28 = scalar_select %p27, 0, %s26
    %s29 = ssub.s32 %s16, %s28
    %s30 = ssub.s32 %s17, %s24
    %s31 = sor.u32 %s29, %s30
    %p32 = scmp.eq.s32.totalorder %s31, 0
    %s34 = sadd.s32 %s33, 1
    %s35 = scalar_select %p32, %s33, %s34
    %p38 = pneg %p32
    %p39 = scmp.eq.s32.totalorder %s9, 3
    %p40 = por %p38, %p39
    %p41 = scmp.ne.s32.totalorder %s33, %s36
    %p42 = scmp.eq.s32.totalorder %s9, 0
    %p43 = por %p41, %p42
    %p44 = scmp.ne.s32.totalorder %s33, %s36
    %p45 = scmp.eq.s32.totalorder %s14, 3
    %p46 = por %p44, %p45
    %p47 = scmp.ne.s32.totalorder %s36, %s37
    %p48 = scmp.eq.s32.totalorder %s14, 0
    %p49 = por %p47, %p48
    %p50 = scmp.ne.s32.totalorder %s36, %s37
    %p51 = scmp.eq.s32.totalorder %s15, 3
    %p52 = por %p50, %p51
    %p54 = scmp.ne.s32.totalorder %s37, %s53
    %p55 = scmp.eq.s32.totalorder %s15, 0
    %p56 = por %p54, %p55
    %s57 = ssub.s32 %s16, %s28
    %p58 = scmp.eq.s32.totalorder %s57, 0
    %s60 = sadd.s32 %s59, 1
    %s61 = scalar_select %p58, %s59, %s60
    %p64 = pneg %p58
    %p65 = scmp.eq.s32.totalorder %s9, 3
    %p66 = por %p64, %p65
    %p67 = scmp.ne.s32.totalorder %s59, %s62
    %p68 = scmp.eq.s32.totalorder %s9, 0
    %p69 = por %p67, %p68
    %p70 = scmp.ne.s32.totalorder %s59, %s62
    %p71 = scmp.eq.s32.totalorder %s14, 3
    %p72 = por %p70, %p71
    %p73 = scmp.ne.s32.totalorder %s62, %s63
    %p74 = scmp.eq.s32.totalorder %s14, 0
    %p75 = por %p73, %p74
    %p76 = scmp.ne.s32.totalorder %s62, %s63
    %p77 = scmp.eq.s32.totalorder %s15, 3
    %p78 = por %p76, %p77
    %p80 = scmp.ne.s32.totalorder %s63, %s79
    %p81 = scmp.eq.s32.totalorder %s15, 0
    %p82 = por %p80, %p81
    %s83 = ssub.s32 %s16, %s28
    %p84 = scmp.eq.s32.totalorder %s83, 0
    %s86 = sadd.s32 %s85, 1
    %s87 = scalar_select %p84, %s85, %s86
    %p90 = pneg %p84
    %p91 = scmp.eq.s32.totalorder %s9, 3
    %p92 = por %p90, %p91
    %p93 = scmp.ne.s32.totalorder %s85, %s88
    %p94 = scmp.eq.s32.totalorder %s9, 0
    %p95 = por %p93, %p94
    %p96 = scmp.ne.s32.totalorder %s85, %s88
    %p97 = scmp.eq.s32.totalorder %s14, 3
    %p98 = por %p96, %p97
    %p99 = scmp.ne.s32.totalorder %s88, %s89
    %p100 = scmp.eq.s32.totalorder %s14, 0
    %p101 = por %p99, %p100
    %p102 = scmp.ne.s32.totalorder %s88, %s89
    %p103 = scmp.eq.s32.totalorder %s15, 3
    %p104 = por %p102, %p103
    %p106 = scmp.ne.s32.totalorder %s89, %s105
    %p107 = scmp.eq.s32.totalorder %s15, 0
    %p108 = por %p106, %p107
    %s109 = ssub.s32 %s16, %s28
    %s110 = ssub.s32 %s17, %s24
    %s111 = sor.u32 %s109, %s110
    %p112 = scmp.eq.s32.totalorder %s111, 0
    %s114 = sadd.s32 %s113, 1
    %s115 = scalar_select %p112, %s113, %s114
    %p118 = pneg %p112
    %p119 = scmp.eq.s32.totalorder %s9, 3
    %p120 = por %p118, %p119
    %p121 = scmp.ne.s32.totalorder %s113, %s116
    %p122 = scmp.eq.s32.totalorder %s9, 0
    %p123 = por %p121, %p122
    %p124 = scmp.ne.s32.totalorder %s113, %s116
    %p125 = scmp.eq.s32.totalorder %s14, 3
    %p126 = por %p124, %p125
    %p127 = scmp.ne.s32.totalorder %s116, %s117
    %p128 = scmp.eq.s32.totalorder %s14, 0
    %p129 = por %p127, %p128
    %p130 = scmp.ne.s32.totalorder %s116, %s117
    %p131 = scmp.eq.s32.totalorder %s15, 3
    %p132 = por %p130, %p131
    %p134 = scmp.ne.s32.totalorder %s117, %s133
    %p135 = scmp.eq.s32.totalorder %s15, 0
    %p136 = por %p134, %p135
    %p137 = scmp.le.s32.totalorder 1, %s9
    %p138 = scmp.lt.s32.totalorder %s9, 5
    %p139 = pnand %p137, %p138
    %p140 = pneg %p139
    // Predicated region
    $region9: #{sampler_forward.3} parent=5 // pred_check
      _
    $region10: #{sampler_forward.3} parent=5 // pred_check_branch
      %142 = sbr.rel (%p139) target = $region12
    $region11: #{sampler_forward.3} parent=5 // pred_region
      %s143 = ssub.s32 %s9, 1
    $region12: #{sampler_forward.3} parent=5 // pred_fallthru
      _
    %p144 = scmp.lt.s32.totalorder %s9, 4
    // Predicated region
    $region13: #{sampler_forward.3} parent=5 // pred_check
      %p145 = pneg %p144
    $region14: #{sampler_forward.3} parent=5 // pred_check_branch
      %147 = sbr.rel (%p145) target = $region16
    $region15: #{sampler_forward.3} parent=5 // pred_region
      // Predicated region
      $region17: #{sampler_forward.3} parent=15 // pred_check
        %p148 = pneg %p43
      $region18: #{sampler_forward.3} parent=15 // pred_check_branch
        %150 = sbr.rel (%p148) target = $region20
      $region19: #{sampler_forward.3} parent=15 // pred_region
        %s151 = smul.u32 4, %s17
        %p152 = scmp.lt.s32.totalorder %s16, 1
        %s153 = scalar_select %p152, %s16, 1
        %p154 = scmp.lt.s32.totalorder %s151, 7
        %s155 = scalar_select %p154, %s151, 7
        %s156 = smul.addr %s153, 8
        %s157 = sadd.s32 %s155, %s156
        %s158 = smul.addr %s157, 4
        %s159 = scalar_lea.vmem %s0, %s158
        %s160 = smul.u32 4, %s17
      $region20: #{sampler_forward.3} parent=15 // pred_fallthru
        _
      // Predicated region
      $region21: #{sampler_forward.3} parent=15 // pred_check
        %p161 = pneg %p69
      $region22: #{sampler_forward.3} parent=15 // pred_check_branch
        %163 = sbr.rel (%p161) target = $region24
      $region23: #{sampler_forward.3} parent=15 // pred_region
        %p164 = scmp.lt.s32.totalorder %s16, 1
        %s165 = scalar_select %p164, %s16, 1
        %s166 = scalar_lea.vmem %s1, %s165
      $region24: #{sampler_forward.3} parent=15 // pred_fallthru
        _
      // Predicated region
      $region25: #{sampler_forward.3} parent=15 // pred_check
        %p167 = pneg %p95
      $region26: #{sampler_forward.3} parent=15 // pred_check_branch
        %169 = sbr.rel (%p167) target = $region28
      $region27: #{sampler_forward.3} parent=15 // pred_region
        %p170 = scmp.lt.s32.totalorder %s16, 1
        %s171 = scalar_select %p170, %s16, 1
        %s172 = scalar_lea.vmem %s2, %s171
      $region28: #{sampler_forward.3} parent=15 // pred_fallthru
        _
    $region16: #{sampler_forward.3} parent=5 // pred_fallthru
      _
    %p173 = scmp.le.s32.totalorder 1, %s9
    %p174 = scmp.lt.s32.totalorder %s9, 5
    %p175 = pnand %p173, %p174
    %p176 = pneg %p175
    // Predicated region
    $region29: #{sampler_forward.3} parent=5 // pred_check
      _
    $region30: #{sampler_forward.3} parent=5 // pred_check_branch
      %178 = sbr.rel (%p175) target = $region32
    $region31: #{sampler_forward.3} parent=5 // pred_region
      %s179 = ssub.s32 %s9, 1
      %s180 = smul.u32 4, %s19
      %p181 = scmp.lt.s32.totalorder %s18, 1
      %s182 = scalar_select %p181, %s18, 1
      %p183 = scmp.lt.s32.totalorder %s180, 7
      %s184 = scalar_select %p183, %s180, 7
      %s185 = smul.addr %s182, 8
      %s186 = sadd.s32 %s184, %s185
      %s187 = smul.addr %s186, 4
      %s188 = scalar_lea.vmem %s0, %s187
      %p189 = pneg %p49
      %p190 = pneg %p46
      %p191 = scmp.lt.s32.totalorder %s18, 1
      %s192 = scalar_select %p191, %s18, 1
      %s193 = scalar_lea.vmem %s1, %s192
      %p194 = pneg %p75
      %p195 = pneg %p72
      %p196 = scmp.lt.s32.totalorder %s18, 1
      %s197 = scalar_select %p196, %s18, 1
      %s198 = scalar_lea.vmem %s2, %s197
      %p199 = pneg %p101
      %p200 = pneg %p98
      %p201 = pneg %p129
      %p202 = pneg %p126
      %s203 = smul.u32 4, %s19
      %p204 = scmp.lt.s32.totalorder %s18, 1
      %s205 = scalar_select %p204, %s18, 1
      %p206 = scmp.lt.s32.totalorder %s203, 7
      %s207 = scalar_select %p206, %s203, 7
      %s208 = smul.addr %s205, 8
      %s209 = sadd.s32 %s207, %s208
      %s210 = smul.addr %s209, 8
      %s211 = scalar_lea.vmem %s3, %s210
      %s212 = smul.u32 4, %s19
      %p213 = scmp.lt.s32.totalorder %s18, 1
      %s214 = scalar_select %p213, %s18, 1
      %p215 = scmp.lt.s32.totalorder %s212, 7
      %s216 = scalar_select %p215, %s212, 7
      %s217 = smul.addr %s214, 8
      %s218 = sadd.s32 %s216, %s217
      %s219 = smul.addr %s218, 4
      %s220 = scalar_lea.vmem %s0, %s219
      %s221 = smul.u32 4, %s19
      %p222 = scmp.lt.s32.totalorder %s18, 1
      %s223 = scalar_select %p222, %s18, 1
      %s224 = scalar_lea.vmem %s1, %s223
      %p225 = scmp.lt.s32.totalorder %s18, 1
      %s226 = scalar_select %p225, %s18, 1
      %s227 = scalar_lea.vmem %s2, %s226
      %s228 = smul.u32 4, %s19
      %p229 = scmp.lt.s32.totalorder %s18, 1
      %s230 = scalar_select %p229, %s18, 1
      %p231 = scmp.lt.s32.totalorder %s228, 7
      %s232 = scalar_select %p231, %s228, 7
      %s233 = smul.addr %s230, 8
      %s234 = sadd.s32 %s232, %s233
      %s235 = smul.addr %s234, 8
      %s236 = scalar_lea.vmem %s3, %s235
      %s237 = smul.u32 4, %s19
      %v238 = vld [vmem:[%s224] sm:$0x1]
      %v239 = vmul.f32 %v238, 0.015625
      %v240 = vld [vmem:[%s227] sm:$0x1]
      %v241 = vmul.f32 %v240, 0.015625
      %v242 = vmul.f32 %v239, %v239
      %v243 = vsub.f32 %v241, %v242
      %v244 = vmax.f32 %v243, 0.0
      %v245 = vadd.f32 %v244, 1e-05
      %v246 = vrsqrt.pop %v245
      %v247 = vld [vmem:[%s220] sm:$0xf]
      %v248 = vld [vmem:[%s220 + $0x4] sm:$0xf]
      %v249 = vld [vmem:[%s220 + $0x8] sm:$0xf]
      %v250 = vld [vmem:[%s220 + $0xc] sm:$0xf]
      %v251 = vunpack.c.l.bf16 %v247
      %v252 = vunpack.c.l.bf16 %v248
      %v253 = vunpack.c.l.bf16 %v249
      %v254 = vunpack.c.l.bf16 %v250
      %v256 = vlaneseq
      %v257 = vshrl.u32 %v256, 7
      %v258 = vsub.s32 0, %v257
      %v259 = vrot.slane %v239, %v258
      %v261 = vsub.f32 %v251, %v259
      %v262 = vsub.f32 %v252, %v259
      %v263 = vsub.f32 %v253, %v259
      %v264 = vsub.f32 %v254, %v259
      %v266 = vlaneseq
      %v267 = vshrl.u32 %v266, 7
      %v268 = vsub.s32 0, %v267
      %v269 = vrot.slane %v246, %v268
      %v271 = vmul.f32 %v261, %v269
      %v272 = vmul.f32 %v262, %v269
      %v273 = vmul.f32 %v263, %v269
      %v274 = vmul.f32 %v264, %v269
      %v275 = vmax.f32 %v271, 0.0
      %v276 = vmax.f32 %v272, 0.0
      %v277 = vmax.f32 %v273, 0.0
      %v278 = vmax.f32 %v274, 0.0
      %279 = vst [vmem:[%s236] sm:$0xff] %v275
      %280 = vst [vmem:[%s236 + $0x8] sm:$0xff] %v276
      %281 = vst [vmem:[%s236 + $0x10] sm:$0xff] %v277
      %282 = vst [vmem:[%s236 + $0x18] sm:$0xff] %v278
      %s283 = smul.u32 4, %s19
      %p284 = scmp.lt.s32.totalorder %s18, 1
      %s285 = scalar_select %p284, %s18, 1
      %p286 = scmp.lt.s32.totalorder %s283, 7
      %s287 = scalar_select %p286, %s283, 7
      %s288 = smul.addr %s285, 8
      %s289 = sadd.s32 %s287, %s288
      %s290 = smul.addr %s289, 8
      %s291 = scalar_lea.vmem %s3, %s290
      // Predicated region
      $region33: #{sampler_forward.3} parent=31 // pred_check
        %p292 = pneg %p126
      $region34: #{sampler_forward.3} parent=31 // pred_check_branch
        %294 = sbr.rel (%p292) target = $region36
      $region35: #{sampler_forward.3} parent=31 // pred_region
        %s295 = smul.u32 4, %s19
      $region36: #{sampler_forward.3} parent=31 // pred_fallthru
        _
    $region32: #{sampler_forward.3} parent=5 // pred_fallthru
      _
    %p296 = scmp.le.s32.totalorder 2, %s9
    // Predicated region
    $region37: #{sampler_forward.3} parent=5 // pred_check
      %p297 = pneg %p296
    $region38: #{sampler_forward.3} parent=5 // pred_check_branch
      %299 = sbr.rel (%p297) target = $region40
    $region39: #{sampler_forward.3} parent=5 // pred_region
      %s300 = ssub.s32 %s9, 2
      // Predicated region
      $region41: #{sampler_forward.3} parent=39 // pred_check
        %p301 = pneg %p132
      $region42: #{sampler_forward.3} parent=39 // pred_check_branch
        %303 = sbr.rel (%p301) target = $region44
      $region43: #{sampler_forward.3} parent=39 // pred_region
        %s304 = smul.u32 4, %s21
        %p305 = scmp.lt.s32.totalorder %s20, 1
        %s306 = scalar_select %p305, %s20, 1
        %p307 = scmp.lt.s32.totalorder %s304, 7
        %s308 = scalar_select %p307, %s304, 7
        %s309 = smul.addr %s306, 8
        %s310 = sadd.s32 %s308, %s309
        %s311 = smul.addr %s310, 8
        %s312 = scalar_lea.vmem %s3, %s311
      $region44: #{sampler_forward.3} parent=39 // pred_fallthru
        _
    $region40: #{sampler_forward.3} parent=5 // pred_fallthru
      _
  $region6: #{sampler_forward.3} parent=0 // loop_footer
    %s13 = sadd.s32 1, %s9
  $region7: #{sampler_forward.3} parent=0 // loop_footer_branch
    %8 = sbr.rel target = $region3
  $region8: #{sampler_forward.3} parent=0 // loop_exit
    _

// kernel: sampler_forward.2
$region0: #{sampler_forward.2}
  #allocation0 [shape = 'u32[]', space=smem, size = 0x4, offset = 0x4, fixed_abs, tag = 'smem constant byte address 0x4 - core index']
  #allocation1 [shape = 'u32[144,128]{1,0:T(1,128)}', space=vmem, size = 0x12000, scoped, tag = 'internal scratch']
  #allocation2 [shape = 'bf16[4,5,9,4]{3,2,1,0:T(8,128)(2,1)}', space=vmem, size = 0x14000, scoped, tag = 'scratch operand']
  %s0 = inlined_call_operand.vmem [shape: bf16[8,8,9,4], index: 0, kind: input, shape index: {}]
  %s1 = inlined_call_operand.vmem [shape: bf16[8,2,9,4], index: 1, kind: input, shape index: {}]
  %s2 = inlined_call_operand.vmem [shape: bf16[9,4,128], index: 2, kind: input, shape index: {}]
  %s3 = inlined_call_operand.vmem [shape: bf16[2,64,128], index: 3, kind: output, shape index: {0}]
  %s4 = inlined_call_operand.vmem [shape: f32[2,1,128], index: 4, kind: output, shape index: {1}]
  %s5 = inlined_call_operand.vmem [shape: f32[2,1,128], index: 5, kind: output, shape index: {2}]
  %6 = xla_tuple %s3, %s4, %s5
  %s7 = sld [smem:[#allocation0]]
  $region147: #{sampler_forward.2} parent=0
    _
  %s9 = ssub.s32 1, %s7
  %s10 = scalar_select 0, %s9, %s7
  $region1: #{sampler_forward.2} parent=0
    #allocation3 [shape = 'u8[131072]{0}', space=vmem, size = 0x20000, scoped, tag = 'input window, operand 0']
    #allocation4 [shape = 'u8[32768]{0}', space=vmem, size = 0x8000, scoped, tag = 'input window, operand 1']
    loop: start=0, step=1, limit=6
    $region2: #{sampler_forward.2} parent=1 // loop_pre_header
      _
    $region3: #{sampler_forward.2} parent=1 // loop_header
      %s12 = sphi 0, %s16
      %p13 = scmp.ge.s32.totalorder %s12, 6
      %s19 = sphi 0, %s31
      %s20 = sphi 0, %s27
      %s21 = sphi 0, %s19
      %s22 = sphi 0, %s20
      %s23 = sphi 0, %s21
      %s24 = sphi 0, %s22
      %s36 = sphi 0, %s38
      %s39 = sphi 0, %s36
      %s40 = sphi 0, %s39
      %s56 = sphi 0, %s40
      %s64 = sphi 0, %s66
      %s67 = sphi 0, %s64
      %s68 = sphi 0, %s67
      %s84 = sphi 0, %s68
      %s88 = sphi 0, %s88
      %s90 = sphi 0, %s88
      %s91 = sphi 0, %s90
      %s105 = sphi 0, %s91
      %s113 = sphi 0, %s115
      %s116 = sphi 0, %s113
      %s117 = sphi 0, %s116
      %s133 = sphi 0, %s117
      %s139 = sphi 0, %s141
      %s142 = sphi 0, %s139
      %s143 = sphi 0, %s142
      %s159 = sphi 0, %s143
      %s165 = sphi 0, %s167
      %s168 = sphi 0, %s165
      %s169 = sphi 0, %s168
      %s185 = sphi 0, %s169
    $region4: #{sampler_forward.2} parent=1 // loop_header_branch
      %15 = sbr.rel (%p13) target = $region8
    $region5: #{sampler_forward.2} parent=1 // loop_body
      %s17 = ssub.s32 %s12, 1
      %s18 = ssub.s32 %s12, 2
      %s25 = sadd.s32 1, %s20
      %p26 = scmp.ge.s32.totalorder %s25, 2
      %s27 = scalar_select %p26, 0, %s25
      %s28 = sadd.s32 1, %s19
      %s29 = scalar_select %p26, %s28, %s19
      %p30 = scmp.ge.s32.totalorder %s29, 2
      %s31 = scalar_select %p30, 0, %s29
      %s32 = ssub.s32 %s19, %s31
      %s33 = ssub.s32 %s20, %s27
      %s34 = sor.u32 %s32, %s33
      %p35 = scmp.eq.s32.totalorder %s34, 0
      %s37 = sadd.s32 %s36, 1
      %s38 = scalar_select %p35, %s36, %s37
      %p41 = pneg %p35
      %p42 = scmp.eq.s32.totalorder %s12, 3
      %p43 = por %p41, %p42
      %p44 = scmp.ne.s32.totalorder %s36, %s39
      %p45 = scmp.eq.s32.totalorder %s12, 0
      %p46 = por %p44, %p45
      %p47 = scmp.ne.s32.totalorder %s36, %s39
      %p48 = scmp.eq.s32.totalorder %s17, 3
      %p49 = por %p47, %p48
      %p50 = scmp.ne.s32.totalorder %s39, %s40
      %p51 = scmp.eq.s32.totalorder %s17, 0
      %p52 = por %p50, %p51
      %p53 = scmp.ne.s32.totalorder %s39, %s40
      %p54 = scmp.eq.s32.totalorder %s18, 3
      %p55 = por %p53, %p54
      %p57 = scmp.ne.s32.totalorder %s40, %s56
      %p58 = scmp.eq.s32.totalorder %s18, 0
      %p59 = por %p57, %p58
      %s60 = ssub.s32 %s19, %s31
      %s61 = ssub.s32 %s20, %s27
      %s62 = sor.u32 %s60, %s61
      %p63 = scmp.eq.s32.totalorder %s62, 0
      %s65 = sadd.s32 %s64, 1
      %s66 = scalar_select %p63, %s64, %s65
      %p69 = pneg %p63
      %p70 = scmp.eq.s32.totalorder %s12, 3
      %p71 = por %p69, %p70
      %p72 = scmp.ne.s32.totalorder %s64, %s67
      %p73 = scmp.eq.s32.totalorder %s12, 0
      %p74 = por %p72, %p73
      %p75 = scmp.ne.s32.totalorder %s64, %s67
      %p76 = scmp.eq.s32.totalorder %s17, 3
      %p77 = por %p75, %p76
      %p78 = scmp.ne.s32.totalorder %s67, %s68
      %p79 = scmp.eq.s32.totalorder %s17, 0
      %p80 = por %p78, %p79
      %p81 = scmp.ne.s32.totalorder %s67, %s68
      %p82 = scmp.eq.s32.totalorder %s18, 3
      %p83 = por %p81, %p82
      %p85 = scmp.ne.s32.totalorder %s68, %s84
      %p86 = scmp.eq.s32.totalorder %s18, 0
      %p87 = por %p85, %p86
      %s89 = sadd.s32 %s88, 1
      %p92 = scmp.eq.s32.totalorder %s12, 3
      %p93 = scmp.ne.s32.totalorder %s88, %s90
      %p94 = scmp.eq.s32.totalorder %s12, 0
      %p95 = por %p93, %p94
      %p96 = scmp.ne.s32.totalorder %s88, %s90
      %p97 = scmp.eq.s32.totalorder %s17, 3
      %p98 = por %p96, %p97
      %p99 = scmp.ne.s32.totalorder %s90, %s91
      %p100 = scmp.eq.s32.totalorder %s17, 0
      %p101 = por %p99, %p100
      %p102 = scmp.ne.s32.totalorder %s90, %s91
      %p103 = scmp.eq.s32.totalorder %s18, 3
      %p104 = por %p102, %p103
      %p106 = scmp.ne.s32.totalorder %s91, %s105
      %p107 = scmp.eq.s32.totalorder %s18, 0
      %p108 = por %p106, %p107
      %s109 = ssub.s32 %s19, %s31
      %s110 = ssub.s32 %s20, %s27
      %s111 = sor.u32 %s109, %s110
      %p112 = scmp.eq.s32.totalorder %s111, 0
      %s114 = sadd.s32 %s113, 1
      %s115 = scalar_select %p112, %s113, %s114
      %p118 = pneg %p112
      %p119 = scmp.eq.s32.totalorder %s12, 3
      %p120 = por %p118, %p119
      %p121 = scmp.ne.s32.totalorder %s113, %s116
      %p122 = scmp.eq.s32.totalorder %s12, 0
      %p123 = por %p121, %p122
      %p124 = scmp.ne.s32.totalorder %s113, %s116
      %p125 = scmp.eq.s32.totalorder %s17, 3
      %p126 = por %p124, %p125
      %p127 = scmp.ne.s32.totalorder %s116, %s117
      %p128 = scmp.eq.s32.totalorder %s17, 0
      %p129 = por %p127, %p128
      %p130 = scmp.ne.s32.totalorder %s116, %s117
      %p131 = scmp.eq.s32.totalorder %s18, 3
      %p132 = por %p130, %p131
      %p134 = scmp.ne.s32.totalorder %s117, %s133
      %p135 = scmp.eq.s32.totalorder %s18, 0
      %p136 = por %p134, %p135
      %s137 = ssub.s32 %s19, %s31
      %p138 = scmp.eq.s32.totalorder %s137, 0
      %s140 = sadd.s32 %s139, 1
      %s141 = scalar_select %p138, %s139, %s140
      %p144 = pneg %p138
      %p145 = scmp.eq.s32.totalorder %s12, 3
      %p146 = por %p144, %p145
      %p147 = scmp.ne.s32.totalorder %s139, %s142
      %p148 = scmp.eq.s32.totalorder %s12, 0
      %p149 = por %p147, %p148
      %p150 = scmp.ne.s32.totalorder %s139, %s142
      %p151 = scmp.eq.s32.totalorder %s17, 3
      %p152 = por %p150, %p151
      %p153 = scmp.ne.s32.totalorder %s142, %s143
      %p154 = scmp.eq.s32.totalorder %s17, 0
      %p155 = por %p153, %p154
      %p156 = scmp.ne.s32.totalorder %s142, %s143
      %p157 = scmp.eq.s32.totalorder %s18, 3
      %p158 = por %p156, %p157
      %p160 = scmp.ne.s32.totalorder %s143, %s159
      %p161 = scmp.eq.s32.totalorder %s18, 0
      %p162 = por %p160, %p161
      %s163 = ssub.s32 %s19, %s31
      %p164 = scmp.eq.s32.totalorder %s163, 0
      %s166 = sadd.s32 %s165, 1
      %s167 = scalar_select %p164, %s165, %s166
      %p170 = pneg %p164
      %p171 = scmp.eq.s32.totalorder %s12, 3
      %p172 = por %p170, %p171
      %p173 = scmp.ne.s32.totalorder %s165, %s168
      %p174 = scmp.eq.s32.totalorder %s12, 0
      %p175 = por %p173, %p174
      %p176 = scmp.ne.s32.totalorder %s165, %s168
      %p177 = scmp.eq.s32.totalorder %s17, 3
      %p178 = por %p176, %p177
      %p179 = scmp.ne.s32.totalorder %s168, %s169
      %p180 = scmp.eq.s32.totalorder %s17, 0
      %p181 = por %p179, %p180
      %p182 = scmp.ne.s32.totalorder %s168, %s169
      %p183 = scmp.eq.s32.totalorder %s18, 3
      %p184 = por %p182, %p183
      %p186 = scmp.ne.s32.totalorder %s169, %s185
      %p187 = scmp.eq.s32.totalorder %s18, 0
      %p188 = por %p186, %p187
      %p189 = scmp.le.s32.totalorder 1, %s12
      %p190 = scmp.lt.s32.totalorder %s12, 5
      %p191 = pnand %p189, %p190
      %p192 = pneg %p191
      // Predicated region
      $region9: #{sampler_forward.2} parent=5 // pred_check
        _
      $region10: #{sampler_forward.2} parent=5 // pred_check_branch
        %194 = sbr.rel (%p191) target = $region12
      $region11: #{sampler_forward.2} parent=5 // pred_region
        %s195 = ssub.s32 %s12, 1
        // Predicated region
        $region13: #{sampler_forward.2} parent=11 // pred_check
          %p196 = pneg %p101
        $region14: #{sampler_forward.2} parent=11 // pred_check_branch
          %198 = sbr.rel (%p196) target = $region16
        $region15: #{sampler_forward.2} parent=11 // pred_region
          _
        $region16: #{sampler_forward.2} parent=11 // pred_fallthru
          _
      $region12: #{sampler_forward.2} parent=5 // pred_fallthru
        _
      %p199 = scmp.lt.s32.totalorder %s12, 4
      // Predicated region
      $region17: #{sampler_forward.2} parent=5 // pred_check
        %p200 = pneg %p199
      $region18: #{sampler_forward.2} parent=5 // pred_check_branch
        %202 = sbr.rel (%p200) target = $region20
      $region19: #{sampler_forward.2} parent=5 // pred_region
        // Predicated region
        $region21: #{sampler_forward.2} parent=19 // pred_check
          %p203 = pneg %p46
        $region22: #{sampler_forward.2} parent=19 // pred_check_branch
          %205 = sbr.rel (%p203) target = $region24
        $region23: #{sampler_forward.2} parent=19 // pred_region
          %s206 = sand.u32 %s36, 1
          %s207 = sand.u32 %s36, 1
          %s208 = smul.addr %s207, 128
          %s209 = scalar_lea.vmem [#allocation3], %s208
          %s210 = smul.u32 4, %s19
          %s211 = smul.u32 4, %s20
          %s212 = smul.addr %s211, 2
          %s213 = smul.addr %s210, 16
          %s214 = sadd.s32 %s212, %s213
          %s215 = smul.addr %s214, 4
          %s216 = scalar_lea.vmem %s0, %s215
          // Predicated region
          $region25: #{sampler_forward.2} parent=23 // pred_check
            _
          $region26: #{sampler_forward.2} parent=23 // pred_check_branch
            %218 = sbr.rel (0) target = $region28
          $region27: #{sampler_forward.2} parent=23 // pred_region
            // Predicated region
            $region29: #{sampler_forward.2} parent=27 // pred_check
              _
            $region30: #{sampler_forward.2} parent=27 // pred_check_branch
              %220 = sbr.rel target = $region32
            $region31: #{sampler_forward.2} parent=27 // pred_region
              // Predicated region
              $region44: #{sampler_forward.2} parent=31 // pred_check
                _
              $region45: #{sampler_forward.2} parent=31 // pred_check_branch
                %298 = sbr.rel (0) target = $region47
              $region46: #{sampler_forward.2} parent=31 // pred_region
                loop: start=0, step=1, limit=1
                $region48: #{sampler_forward.2} parent=46 // loop_pre_header
                  _
                $region49: #{sampler_forward.2} parent=46 // loop_header
                  %s300 = sphi 0, %s304
                  %p301 = scmp.ge.s32.totalorder %s300, 1
                  %s305 = sphi %s216, %s216
                  %s306 = sphi %s209, %s209
                $region50: #{sampler_forward.2} parent=46 // loop_header_branch
                  %303 = sbr.rel (%p301) target = $region54
                $region51: #{sampler_forward.2} parent=46 // loop_body
                  _
                $region52: #{sampler_forward.2} parent=46 // loop_footer
                  %s304 = sadd.s32 1, %s300
                $region53: #{sampler_forward.2} parent=46 // loop_footer_branch
                  %299 = sbr.rel target = $region49
                $region54: #{sampler_forward.2} parent=46 // loop_exit
                  _
                %s308 = ssub.s32 16, 1
                loop: start=0, step=1, limit=1
                $region55: #{sampler_forward.2} parent=46 // loop_pre_header
                  _
                $region56: #{sampler_forward.2} parent=46 // loop_header
                  %s310 = sphi 0, %s314
                  %p311 = scmp.ge.s32.totalorder %s310, 1
                  %s315 = sphi %s216, %s216
                  %s316 = sphi %s209, %s209
                $region57: #{sampler_forward.2} parent=46 // loop_header_branch
                  %313 = sbr.rel (%p311) target = $region61
                $region58: #{sampler_forward.2} parent=46 // loop_body
                  %v317 = vld [vmem:[%s315] sm:%s308]
                  %318 = vst [vmem:[%s316] sm:%s308] %v317
                  %v319 = vld [vmem:[%s315 + $0x4] sm:%s308]
                  %320 = vst [vmem:[%s316 + $0x4] sm:%s308] %v319
                  %v321 = vld [vmem:[%s315 + $0x8] sm:%s308]
                  %322 = vst [vmem:[%s316 + $0x8] sm:%s308] %v321
                  %v323 = vld [vmem:[%s315 + $0xc] sm:%s308]
                  %324 = vst [vmem:[%s316 + $0xc] sm:%s308] %v323
                  %v325 = vld [vmem:[%s315 + $0x10] sm:%s308]
                  %326 = vst [vmem:[%s316 + $0x10] sm:%s308] %v325
                  %v327 = vld [vmem:[%s315 + $0x14] sm:%s308]
                  %328 = vst [vmem:[%s316 + $0x14] sm:%s308] %v327
                  %v329 = vld [vmem:[%s315 + $0x18] sm:%s308]
                  %330 = vst [vmem:[%s316 + $0x18] sm:%s308] %v329
                  %v331 = vld [vmem:[%s315 + $0x1c] sm:%s308]
                  %332 = vst [vmem:[%s316 + $0x1c] sm:%s308] %v331
                  %v333 = vld [vmem:[%s315 + $0x40] sm:%s308]
                  %334 = vst [vmem:[%s316 + $0x20] sm:%s308] %v333
                  %v335 = vld [vmem:[%s315 + $0x44] sm:%s308]
                  %336 = vst [vmem:[%s316 + $0x24] sm:%s308] %v335
                  %v337 = vld [vmem:[%s315 + $0x48] sm:%s308]
                  %338 = vst [vmem:[%s316 + $0x28] sm:%s308] %v337
                  %v339 = vld [vmem:[%s315 + $0x4c] sm:%s308]
                  %340 = vst [vmem:[%s316 + $0x2c] sm:%s308] %v339
                  %v341 = vld [vmem:[%s315 + $0x50] sm:%s308]
                  %342 = vst [vmem:[%s316 + $0x30] sm:%s308] %v341
                  %v343 = vld [vmem:[%s315 + $0x54] sm:%s308]
                  %344 = vst [vmem:[%s316 + $0x34] sm:%s308] %v343
                  %v345 = vld [vmem:[%s315 + $0x58] sm:%s308]
                  %346 = vst [vmem:[%s316 + $0x38] sm:%s308] %v345
                  %v347 = vld [vmem:[%s315 + $0x5c] sm:%s308]
                  %348 = vst [vmem:[%s316 + $0x3c] sm:%s308] %v347
                  %v349 = vld [vmem:[%s315 + $0x80] sm:%s308]
                  %350 = vst [vmem:[%s316 + $0x40] sm:%s308] %v349
                  %v351 = vld [vmem:[%s315 + $0x84] sm:%s308]
                  %352 = vst [vmem:[%s316 + $0x44] sm:%s308] %v351
                  %v353 = vld [vmem:[%s315 + $0x88] sm:%s308]
                  %354 = vst [vmem:[%s316 + $0x48] sm:%s308] %v353
                  %v355 = vld [vmem:[%s315 + $0x8c] sm:%s308]
                  %356 = vst [vmem:[%s316 + $0x4c] sm:%s308] %v355
                  %v357 = vld [vmem:[%s315 + $0x90] sm:%s308]
                  %358 = vst [vmem:[%s316 + $0x50] sm:%s308] %v357
                  %v359 = vld [vmem:[%s315 + $0x94] sm:%s308]
                  %360 = vst [vmem:[%s316 + $0x54] sm:%s308] %v359
                  %v361 = vld [vmem:[%s315 + $0x98] sm:%s308]
                  %362 = vst [vmem:[%s316 + $0x58] sm:%s308] %v361
                  %v363 = vld [vmem:[%s315 + $0x9c] sm:%s308]
                  %364 = vst [vmem:[%s316 + $0x5c] sm:%s308] %v363
                  %v365 = vld [vmem:[%s315 + $0xc0] sm:%s308]
                  %366 = vst [vmem:[%s316 + $0x60] sm:%s308] %v365
                  %v367 = vld [vmem:[%s315 + $0xc4] sm:%s308]
                  %368 = vst [vmem:[%s316 + $0x64] sm:%s308] %v367
                  %v369 = vld [vmem:[%s315 + $0xc8] sm:%s308]
                  %370 = vst [vmem:[%s316 + $0x68] sm:%s308] %v369
                  %v371 = vld [vmem:[%s315 + $0xcc] sm:%s308]
                  %372 = vst [vmem:[%s316 + $0x6c] sm:%s308] %v371
                  %v373 = vld [vmem:[%s315 + $0xd0] sm:%s308]
                  %374 = vst [vmem:[%s316 + $0x70] sm:%s308] %v373
                  %v375 = vld [vmem:[%s315 + $0xd4] sm:%s308]
                  %376 = vst [vmem:[%s316 + $0x74] sm:%s308] %v375
                  %v377 = vld [vmem:[%s315 + $0xd8] sm:%s308]
                  %378 = vst [vmem:[%s316 + $0x78] sm:%s308] %v377
                  %v379 = vld [vmem:[%s315 + $0xdc] sm:%s308]
                  %380 = vst [vmem:[%s316 + $0x7c] sm:%s308] %v379
                $region59: #{sampler_forward.2} parent=46 // loop_footer
                  %s314 = sadd.s32 1, %s310
                $region60: #{sampler_forward.2} parent=46 // loop_footer_branch
                  %309 = sbr.rel target = $region56
                $region61: #{sampler_forward.2} parent=46 // loop_exit
                  _
              $region47: #{sampler_forward.2} parent=31 // pred_fallthru
                _
            $region32: #{sampler_forward.2} parent=27 // pred_fallthru
              _
            // Predicated region
            $region33: #{sampler_forward.2} parent=27 // pred_check
              _
            $region34: #{sampler_forward.2} parent=27 // pred_check_branch
              %222 = sbr.rel (0) target = $region36
            $region35: #{sampler_forward.2} parent=27 // pred_region
              %s224 = ssub.s32 16, 1
              loop: start=0, step=1, limit=1
              $region37: #{sampler_forward.2} parent=35 // loop_pre_header
                _
              $region38: #{sampler_forward.2} parent=35 // loop_header
                %s226 = sphi 0, %s230
                %p227 = scmp.ge.s32.totalorder %s226, 1
                %s231 = sphi %s216, %s216
                %s232 = sphi %s209, %s209
              $region39: #{sampler_forward.2} parent=35 // loop_header_branch
                %229 = sbr.rel (%p227) target = $region43
              $region40: #{sampler_forward.2} parent=35 // loop_body
                %v233 = vld [vmem:[%s231] sm:%s224]
                %234 = vst [vmem:[%s232] sm:%s224] %v233
                %v235 = vld [vmem:[%s231 + $0x4] sm:%s224]
                %236 = vst [vmem:[%s232 + $0x4] sm:%s224] %v235
                %v237 = vld [vmem:[%s231 + $0x8] sm:%s224]
                %238 = vst [vmem:[%s232 + $0x8] sm:%s224] %v237
                %v239 = vld [vmem:[%s231 + $0xc] sm:%s224]
                %240 = vst [vmem:[%s232 + $0xc] sm:%s224] %v239
                %v241 = vld [vmem:[%s231 + $0x10] sm:%s224]
                %242 = vst [vmem:[%s232 + $0x10] sm:%s224] %v241
                %v243 = vld [vmem:[%s231 + $0x14] sm:%s224]
                %244 = vst [vmem:[%s232 + $0x14] sm:%s224] %v243
                %v245 = vld [vmem:[%s231 + $0x18] sm:%s224]
                %246 = vst [vmem:[%s232 + $0x18] sm:%s224] %v245
                %v247 = vld [vmem:[%s231 + $0x1c] sm:%s224]
                %248 = vst [vmem:[%s232 + $0x1c] sm:%s224] %v247
                %v249 = vld [vmem:[%s231 + $0x40] sm:%s224]
                %250 = vst [vmem:[%s232 + $0x20] sm:%s224] %v249
                %v251 = vld [vmem:[%s231 + $0x44] sm:%s224]
                %252 = vst [vmem:[%s232 + $0x24] sm:%s224] %v251
                %v253 = vld [vmem:[%s231 + $0x48] sm:%s224]
                %254 = vst [vmem:[%s232 + $0x28] sm:%s224] %v253
                %v255 = vld [vmem:[%s231 + $0x4c] sm:%s224]
                %256 = vst [vmem:[%s232 + $0x2c] sm:%s224] %v255
                %v257 = vld [vmem:[%s231 + $0x50] sm:%s224]
                %258 = vst [vmem:[%s232 + $0x30] sm:%s224] %v257
                %v259 = vld [vmem:[%s231 + $0x54] sm:%s224]
                %260 = vst [vmem:[%s232 + $0x34] sm:%s224] %v259
                %v261 = vld [vmem:[%s231 + $0x58] sm:%s224]
                %262 = vst [vmem:[%s232 + $0x38] sm:%s224] %v261
                %v263 = vld [vmem:[%s231 + $0x5c] sm:%s224]
                %264 = vst [vmem:[%s232 + $0x3c] sm:%s224] %v263
                %v265 = vld [vmem:[%s231 + $0x80] sm:%s224]
                %266 = vst [vmem:[%s232 + $0x40] sm:%s224] %v265
                %v267 = vld [vmem:[%s231 + $0x84] sm:%s224]
                %268 = vst [vmem:[%s232 + $0x44] sm:%s224] %v267
                %v269 = vld [vmem:[%s231 + $0x88] sm:%s224]
                %270 = vst [vmem:[%s232 + $0x48] sm:%s224] %v269
                %v271 = vld [vmem:[%s231 + $0x8c] sm:%s224]
                %272 = vst [vmem:[%s232 + $0x4c] sm:%s224] %v271
                %v273 = vld [vmem:[%s231 + $0x90] sm:%s224]
                %274 = vst [vmem:[%s232 + $0x50] sm:%s224] %v273
                %v275 = vld [vmem:[%s231 + $0x94] sm:%s224]
                %276 = vst [vmem:[%s232 + $0x54] sm:%s224] %v275
                %v277 = vld [vmem:[%s231 + $0x98] sm:%s224]
                %278 = vst [vmem:[%s232 + $0x58] sm:%s224] %v277
                %v279 = vld [vmem:[%s231 + $0x9c] sm:%s224]
                %280 = vst [vmem:[%s232 + $0x5c] sm:%s224] %v279
                %v281 = vld [vmem:[%s231 + $0xc0] sm:%s224]
                %282 = vst [vmem:[%s232 + $0x60] sm:%s224] %v281
                %v283 = vld [vmem:[%s231 + $0xc4] sm:%s224]
                %284 = vst [vmem:[%s232 + $0x64] sm:%s224] %v283
                %v285 = vld [vmem:[%s231 + $0xc8] sm:%s224]
                %286 = vst [vmem:[%s232 + $0x68] sm:%s224] %v285
                %v287 = vld [vmem:[%s231 + $0xcc] sm:%s224]
                %288 = vst [vmem:[%s232 + $0x6c] sm:%s224] %v287
                %v289 = vld [vmem:[%s231 + $0xd0] sm:%s224]
                %290 = vst [vmem:[%s232 + $0x70] sm:%s224] %v289
                %v291 = vld [vmem:[%s231 + $0xd4] sm:%s224]
                %292 = vst [vmem:[%s232 + $0x74] sm:%s224] %v291
                %v293 = vld [vmem:[%s231 + $0xd8] sm:%s224]
                %294 = vst [vmem:[%s232 + $0x78] sm:%s224] %v293
                %v295 = vld [vmem:[%s231 + $0xdc] sm:%s224]
                %296 = vst [vmem:[%s232 + $0x7c] sm:%s224] %v295
              $region41: #{sampler_forward.2} parent=35 // loop_footer
                %s230 = sadd.s32 1, %s226
              $region42: #{sampler_forward.2} parent=35 // loop_footer_branch
                %225 = sbr.rel target = $region38
              $region43: #{sampler_forward.2} parent=35 // loop_exit
                _
            $region36: #{sampler_forward.2} parent=27 // pred_fallthru
              _
          $region28: #{sampler_forward.2} parent=23 // pred_fallthru
            _
          %381 = vnop
        $region24: #{sampler_forward.2} parent=19 // pred_fallthru
          _
        // Predicated region
        $region62: #{sampler_forward.2} parent=19 // pred_check
          %p382 = pneg %p74
        $region63: #{sampler_forward.2} parent=19 // pred_check_branch
          %384 = sbr.rel (%p382) target = $region65
        $region64: #{sampler_forward.2} parent=19 // pred_region
          %s385 = sand.u32 %s64, 1
          %s386 = sand.u32 %s64, 1
          %s387 = smul.addr %s386, 32
          %s388 = scalar_lea.vmem [#allocation4], %s387
          %s389 = smul.u32 4, %s19
          %s390 = smul.addr %s20, 2
          %s391 = smul.addr %s389, 4
          %s392 = sadd.s32 %s390, %s391
          %s393 = smul.addr %s392, 4
          %s394 = scalar_lea.vmem %s1, %s393
          // Predicated region
          $region66: #{sampler_forward.2} parent=64 // pred_check
            _
          $region67: #{sampler_forward.2} parent=64 // pred_check_branch
            %396 = sbr.rel (0) target = $region69
          $region68: #{sampler_forward.2} parent=64 // pred_region
            // Predicated region
            $region70: #{sampler_forward.2} parent=68 // pred_check
              _
            $region71: #{sampler_forward.2} parent=68 // pred_check_branch
              %398 = sbr.rel target = $region73
            $region72: #{sampler_forward.2} parent=68 // pred_region
              // Predicated region
              $region85: #{sampler_forward.2} parent=72 // pred_check
                _
              $region86: #{sampler_forward.2} parent=72 // pred_check_branch
                %428 = sbr.rel (0) target = $region88
              $region87: #{sampler_forward.2} parent=72 // pred_region
                loop: start=0, step=1, limit=1
                $region89: #{sampler_forward.2} parent=87 // loop_pre_header
                  _
                $region90: #{sampler_forward.2} parent=87 // loop_header
                  %s430 = sphi 0, %s434
                  %p431 = scmp.ge.s32.totalorder %s430, 1
                  %s435 = sphi %s394, %s394
                  %s436 = sphi %s388, %s388
                $region91: #{sampler_forward.2} parent=87 // loop_header_branch
                  %433 = sbr.rel (%p431) target = $region95
                $region92: #{sampler_forward.2} parent=87 // loop_body
                  _
                $region93: #{sampler_forward.2} parent=87 // loop_footer
                  %s434 = sadd.s32 1, %s430
                $region94: #{sampler_forward.2} parent=87 // loop_footer_branch
                  %429 = sbr.rel target = $region90
                $region95: #{sampler_forward.2} parent=87 // loop_exit
                  _
                %s438 = ssub.s32 16, 1
                loop: start=0, step=1, limit=1
                $region96: #{sampler_forward.2} parent=87 // loop_pre_header
                  _
                $region97: #{sampler_forward.2} parent=87 // loop_header
                  %s440 = sphi 0, %s444
                  %p441 = scmp.ge.s32.totalorder %s440, 1
                  %s445 = sphi %s394, %s394
                  %s446 = sphi %s388, %s388
                $region98: #{sampler_forward.2} parent=87 // loop_header_branch
                  %443 = sbr.rel (%p441) target = $region102
                $region99: #{sampler_forward.2} parent=87 // loop_body
                  %v447 = vld [vmem:[%s445] sm:%s438]
                  %448 = vst [vmem:[%s446] sm:%s438] %v447
                  %v449 = vld [vmem:[%s445 + $0x4] sm:%s438]
                  %450 = vst [vmem:[%s446 + $0x4] sm:%s438] %v449
                  %v451 = vld [vmem:[%s445 + $0x10] sm:%s438]
                  %452 = vst [vmem:[%s446 + $0x8] sm:%s438] %v451
                  %v453 = vld [vmem:[%s445 + $0x14] sm:%s438]
                  %454 = vst [vmem:[%s446 + $0xc] sm:%s438] %v453
                  %v455 = vld [vmem:[%s445 + $0x20] sm:%s438]
                  %456 = vst [vmem:[%s446 + $0x10] sm:%s438] %v455
                  %v457 = vld [vmem:[%s445 + $0x24] sm:%s438]
                  %458 = vst [vmem:[%s446 + $0x14] sm:%s438] %v457
                  %v459 = vld [vmem:[%s445 + $0x30] sm:%s438]
                  %460 = vst [vmem:[%s446 + $0x18] sm:%s438] %v459
                  %v461 = vld [vmem:[%s445 + $0x34] sm:%s438]
                  %462 = vst [vmem:[%s446 + $0x1c] sm:%s438] %v461
                $region100: #{sampler_forward.2} parent=87 // loop_footer
                  %s444 = sadd.s32 1, %s440
                $region101: #{sampler_forward.2} parent=87 // loop_footer_branch
                  %439 = sbr.rel target = $region97
                $region102: #{sampler_forward.2} parent=87 // loop_exit
                  _
              $region88: #{sampler_forward.2} parent=72 // pred_fallthru
                _
            $region73: #{sampler_forward.2} parent=68 // pred_fallthru
              _
            // Predicated region
            $region74: #{sampler_forward.2} parent=68 // pred_check
              _
            $region75: #{sampler_forward.2} parent=68 // pred_check_branch
              %400 = sbr.rel (0) target = $region77
            $region76: #{sampler_forward.2} parent=68 // pred_region
              %s402 = ssub.s32 16, 1
              loop: start=0, step=1, limit=1
              $region78: #{sampler_forward.2} parent=76 // loop_pre_header
                _
              $region79: #{sampler_forward.2} parent=76 // loop_header
                %s404 = sphi 0, %s408
                %p405 = scmp.ge.s32.totalorder %s404, 1
                %s409 = sphi %s394, %s394
                %s410 = sphi %s388, %s388
              $region80: #{sampler_forward.2} parent=76 // loop_header_branch
                %407 = sbr.rel (%p405) target = $region84
              $region81: #{sampler_forward.2} parent=76 // loop_body
                %v411 = vld [vmem:[%s409] sm:%s402]
                %412 = vst [vmem:[%s410] sm:%s402] %v411
                %v413 = vld [vmem:[%s409 + $0x4] sm:%s402]
                %414 = vst [vmem:[%s410 + $0x4] sm:%s402] %v413
                %v415 = vld [vmem:[%s409 + $0x10] sm:%s402]
                %416 = vst [vmem:[%s410 + $0x8] sm:%s402] %v415
                %v417 = vld [vmem:[%s409 + $0x14] sm:%s402]
                %418 = vst [vmem:[%s410 + $0xc] sm:%s402] %v417
                %v419 = vld [vmem:[%s409 + $0x20] sm:%s402]
                %420 = vst [vmem:[%s410 + $0x10] sm:%s402] %v419
                %v421 = vld [vmem:[%s409 + $0x24] sm:%s402]
                %422 = vst [vmem:[%s410 + $0x14] sm:%s402] %v421
                %v423 = vld [vmem:[%s409 + $0x30] sm:%s402]
                %424 = vst [vmem:[%s410 + $0x18] sm:%s402] %v423
                %v425 = vld [vmem:[%s409 + $0x34] sm:%s402]
                %426 = vst [vmem:[%s410 + $0x1c] sm:%s402] %v425
              $region82: #{sampler_forward.2} parent=76 // loop_footer
                %s408 = sadd.s32 1, %s404
              $region83: #{sampler_forward.2} parent=76 // loop_footer_branch
                %403 = sbr.rel target = $region79
              $region84: #{sampler_forward.2} parent=76 // loop_exit
                _
            $region77: #{sampler_forward.2} parent=68 // pred_fallthru
              _
          $region69: #{sampler_forward.2} parent=64 // pred_fallthru
            _
          %463 = vnop
        $region65: #{sampler_forward.2} parent=19 // pred_fallthru
          _
      $region20: #{sampler_forward.2} parent=5 // pred_fallthru
        _
      %p464 = scmp.le.s32.totalorder 1, %s12
      %p465 = scmp.lt.s32.totalorder %s12, 5
      %p466 = pnand %p464, %p465
      %p467 = pneg %p466
      // Predicated region
      $region103: #{sampler_forward.2} parent=5 // pred_check
        _
      $region104: #{sampler_forward.2} parent=5 // pred_check_branch
        %469 = sbr.rel (%p466) target = $region106
      $region105: #{sampler_forward.2} parent=5 // pred_region
        %s470 = ssub.s32 %s12, 1
        %s471 = sand.u32 %s39, 1
        %s472 = sand.u32 %s39, 1
        %s473 = smul.addr %s472, 128
        %s474 = scalar_lea.vmem [#allocation3], %s473
        // Predicated region
        $region107: #{sampler_forward.2} parent=105 // pred_check
          %p475 = pneg %p52
        $region108: #{sampler_forward.2} parent=105 // pred_check_branch
          %477 = sbr.rel (%p475) target = $region110
        $region109: #{sampler_forward.2} parent=105 // pred_region
          _
        $region110: #{sampler_forward.2} parent=105 // pred_fallthru
          _
        %s478 = sand.u32 %s67, 1
        %s479 = sand.u32 %s67, 1
        %s480 = smul.addr %s479, 32
        %s481 = scalar_lea.vmem [#allocation4], %s480
        // Predicated region
        $region111: #{sampler_forward.2} parent=105 // pred_check
          %p482 = pneg %p80
        $region112: #{sampler_forward.2} parent=105 // pred_check_branch
          %484 = sbr.rel (%p482) target = $region114
        $region113: #{sampler_forward.2} parent=105 // pred_region
          _
        $region114: #{sampler_forward.2} parent=105 // pred_fallthru
          _
        %s485 = sand.u32 %s39, 1
        %s486 = sand.u32 %s39, 1
        %s487 = smul.addr %s486, 128
        %s488 = scalar_lea.vmem [#allocation3], %s487
        %p489 = pneg %p52
        %p490 = pneg %p49
        %s491 = sand.u32 %s67, 1
        %s492 = sand.u32 %s67, 1
        %s493 = smul.addr %s492, 32
        %s494 = scalar_lea.vmem [#allocation4], %s493
        %p495 = pneg %p80
        %p496 = pneg %p77
        %p497 = pneg %p101
        %p498 = pneg %p98
        %p499 = pneg %p129
        %p500 = pneg %p126
        %s501 = smul.u32 4, %s22
        %p502 = scmp.lt.s32.totalorder %s21, 1
        %s503 = scalar_select %p502, %s21, 1
        %p504 = scmp.lt.s32.totalorder %s501, 7
        %s505 = scalar_select %p504, %s501, 7
        %s506 = smul.addr %s503, 8
        %s507 = sadd.s32 %s505, %s506
        %s508 = smul.addr %s507, 4
        %s509 = scalar_lea.vmem %s3, %s508
        %p510 = pneg %p155
        %p511 = pneg %p152
        %p512 = scmp.lt.s32.totalorder %s21, 1
        %s513 = scalar_select %p512, %s21, 1
        %s514 = scalar_lea.vmem %s4, %s513
        %p515 = pneg %p181
        %p516 = pneg %p178
        %p517 = scmp.lt.s32.totalorder %s21, 1
        %s518 = scalar_select %p517, %s21, 1
        %s519 = scalar_lea.vmem %s5, %s518
        %s520 = smul.u32 4, %s21
        %s521 = smul.u32 4, %s22
        %s522 = smul.u32 4, %s21
        %s523 = smul.u32 4, %s22
        %p524 = scmp.lt.s32.totalorder %s21, 1
        %s525 = scalar_select %p524, %s21, 1
        %p526 = scmp.lt.s32.totalorder %s523, 7
        %s527 = scalar_select %p526, %s523, 7
        %s528 = smul.addr %s525, 8
        %s529 = sadd.s32 %s527, %s528
        %s530 = smul.addr %s529, 4
        %s531 = scalar_lea.vmem %s3, %s530
        %s532 = smul.u32 4, %s22
        %p533 = scmp.lt.s32.totalorder %s21, 1
        %s534 = scalar_select %p533, %s21, 1
        %s535 = scalar_lea.vmem %s4, %s534
        %p536 = scmp.lt.s32.totalorder %s21, 1
        %s537 = scalar_select %p536, %s21, 1
        %s538 = scalar_lea.vmem %s5, %s537
        %v540 = vld [vmem:[%s474] sm:$0xf]
        %v541 = vld [vmem:[%s474 + $0x4] sm:$0x1]
        %v542 = vld [vmem:[%s474 + $0x8] sm:$0xf]
        %v543 = vld [vmem:[%s474 + $0xc] sm:$0x1]
        %v544 = vld [vmem:[%s474 + $0x10] sm:$0xf]
        %v545 = vld [vmem:[%s474 + $0x14] sm:$0x1]
        %v546 = vld [vmem:[%s474 + $0x18] sm:$0xf]
        %v547 = vld [vmem:[%s474 + $0x1c] sm:$0x1]
        %v548 = vld [vmem:[%s474 + $0x20] sm:$0xf]
        %v549 = vld [vmem:[%s474 + $0x24] sm:$0x1]
        %v550 = vld [vmem:[%s474 + $0x28] sm:$0xf]
        %v551 = vld [vmem:[%s474 + $0x2c] sm:$0x1]
        %v552 = vld [vmem:[%s474 + $0x30] sm:$0xf]
        %v553 = vld [vmem:[%s474 + $0x34] sm:$0x1]
        %v554 = vld [vmem:[%s474 + $0x38] sm:$0xf]
        %v555 = vld [vmem:[%s474 + $0x3c] sm:$0x1]
        %v556 = vld [vmem:[%s474 + $0x40] sm:$0xf]
        %v557 = vld [vmem:[%s474 + $0x44] sm:$0x1]
        %v558 = vld [vmem:[%s474 + $0x48] sm:$0xf]
        %v559 = vld [vmem:[%s474 + $0x4c] sm:$0x1]
        %v560 = vld [vmem:[%s474 + $0x50] sm:$0xf]
        %v561 = vld [vmem:[%s474 + $0x54] sm:$0x1]
        %v562 = vld [vmem:[%s474 + $0x58] sm:$0xf]
        %v563 = vld [vmem:[%s474 + $0x5c] sm:$0x1]
        %v564 = vld [vmem:[%s474 + $0x60] sm:$0xf]
        %v565 = vld [vmem:[%s474 + $0x64] sm:$0x1]
        %v566 = vld [vmem:[%s474 + $0x68] sm:$0xf]
        %v567 = vld [vmem:[%s474 + $0x6c] sm:$0x1]
        %v568 = vld [vmem:[%s474 + $0x70] sm:$0xf]
        %v569 = vld [vmem:[%s474 + $0x74] sm:$0x1]
        %v570 = vld [vmem:[%s474 + $0x78] sm:$0xf]
        %v571 = vld [vmem:[%s474 + $0x7c] sm:$0x1]
        %vm572 = vcmask 27648
        %573 = vst.msk [vmem:[#allocation2] sm:$0xf] %vm572, %v540
        %vm574 = vcmask 24576
        %vm575 = vsmask.f32 256
        %vm576 = vmand %vm574, %vm575
        %v577 = vld [vmem:[#allocation2 + $0x4] sm:$0x1]
        %v578 = vsel %vm576, %v541, %v577
        %579 = vst [vmem:[#allocation2 + $0x4] sm:$0x1] %v578
        %580 = vst.msk [vmem:[#allocation2 + $0x8] sm:$0xf] %vm572, %v542
        %v581 = vld [vmem:[#allocation2 + $0xc] sm:$0x1]
        %v582 = vsel %vm576, %v543, %v581
        %583 = vst [vmem:[#allocation2 + $0xc] sm:$0x1] %v582
        %584 = vst.msk [vmem:[#allocation2 + $0x10] sm:$0xf] %vm572, %v544
        %v585 = vld [vmem:[#allocation2 + $0x14] sm:$0x1]
        %v586 = vsel %vm576, %v545, %v585
        %587 = vst [vmem:[#allocation2 + $0x14] sm:$0x1] %v586
        %588 = vst.msk [vmem:[#allocation2 + $0x18] sm:$0xf] %vm572, %v546
        %v589 = vld [vmem:[#allocation2 + $0x1c] sm:$0x1]
        %v590 = vsel %vm576, %v547, %v589
        %591 = vst [vmem:[#allocation2 + $0x1c] sm:$0x1] %v590
        %592 = vst.msk [vmem:[#allocation2 + $0x28] sm:$0xf] %vm572, %v548
        %v593 = vld [vmem:[#allocation2 + $0x2c] sm:$0x1]
        %v594 = vsel %vm576, %v549, %v593
        %595 = vst [vmem:[#allocation2 + $0x2c] sm:$0x1] %v594
        %596 = vst.msk [vmem:[#allocation2 + $0x30] sm:$0xf] %vm572, %v550
        %v597 = vld [vmem:[#allocation2 + $0x34] sm:$0x1]
        %v598 = vsel %vm576, %v551, %v597
        %599 = vst [vmem:[#allocation2 + $0x34] sm:$0x1] %v598
        %600 = vst.msk [vmem:[#allocation2 + $0x38] sm:$0xf] %vm572, %v552
        %v601 = vld [vmem:[#allocation2 + $0x3c] sm:$0x1]
        %v602 = vsel %vm576, %v553, %v601
        %603 = vst [vmem:[#allocation2 + $0x3c] sm:$0x1] %v602
        %604 = vst.msk [vmem:[#allocation2 + $0x40] sm:$0xf] %vm572, %v554
        %v605 = vld [vmem:[#allocation2 + $0x44] sm:$0x1]
        %v606 = vsel %vm576, %v555, %v605
        %607 = vst [vmem:[#allocation2 + $0x44] sm:$0x1] %v606
        %608 = vst.msk [vmem:[#allocation2 + $0x50] sm:$0xf] %vm572, %v556
        %v609 = vld [vmem:[#allocation2 + $0x54] sm:$0x1]
        %v610 = vsel %vm576, %v557, %v609
        %611 = vst [vmem:[#allocation2 + $0x54] sm:$0x1] %v610
        %612 = vst.msk [vmem:[#allocation2 + $0x58] sm:$0xf] %vm572, %v558
        %v613 = vld [vmem:[#allocation2 + $0x5c] sm:$0x1]
        %v614 = vsel %vm576, %v559, %v613
        %615 = vst [vmem:[#allocation2 + $0x5c] sm:$0x1] %v614
        %616 = vst.msk [vmem:[#allocation2 + $0x60] sm:$0xf] %vm572, %v560
        %v617 = vld [vmem:[#allocation2 + $0x64] sm:$0x1]
        %v618 = vsel %vm576, %v561, %v617
        %619 = vst [vmem:[#allocation2 + $0x64] sm:$0x1] %v618
        %620 = vst.msk [vmem:[#allocation2 + $0x68] sm:$0xf] %vm572, %v562
        %v621 = vld [vmem:[#allocation2 + $0x6c] sm:$0x1]
        %v622 = vsel %vm576, %v563, %v621
        %623 = vst [vmem:[#allocation2 + $0x6c] sm:$0x1] %v622
        %624 = vst.msk [vmem:[#allocation2 + $0x78] sm:$0xf] %vm572, %v564
        %v625 = vld [vmem:[#allocation2 + $0x7c] sm:$0x1]
        %v626 = vsel %vm576, %v565, %v625
        %627 = vst [vmem:[#allocation2 + $0x7c] sm:$0x1] %v626
        %628 = vst.msk [vmem:[#allocation2 + $0x80] sm:$0xf] %vm572, %v566
        %v629 = vld [vmem:[#allocation2 + $0x84] sm:$0x1]
        %v630 = vsel %vm576, %v567, %v629
        %631 = vst [vmem:[#allocation2 + $0x84] sm:$0x1] %v630
        %632 = vst.msk [vmem:[#allocation2 + $0x88] sm:$0xf] %vm572, %v568
        %v633 = vld [vmem:[#allocation2 + $0x8c] sm:$0x1]
        %v634 = vsel %vm576, %v569, %v633
        %635 = vst [vmem:[#allocation2 + $0x8c] sm:$0x1] %v634
        %636 = vst.msk [vmem:[#allocation2 + $0x90] sm:$0xf] %vm572, %v570
        %v637 = vld [vmem:[#allocation2 + $0x94] sm:$0x1]
        %v638 = vsel %vm576, %v571, %v637
        %639 = vst [vmem:[#allocation2 + $0x94] sm:$0x1] %v638
        %v640 = vld [vmem:[%s481] sm:$0xf]
        %v641 = vld [vmem:[%s481 + $0x4] sm:$0x1]
        %v642 = vld [vmem:[%s481 + $0x8] sm:$0xf]
        %v643 = vld [vmem:[%s481 + $0xc] sm:$0x1]
        %v644 = vld [vmem:[%s481 + $0x10] sm:$0xf]
        %v645 = vld [vmem:[%s481 + $0x14] sm:$0x1]
        %v646 = vld [vmem:[%s481 + $0x18] sm:$0xf]
        %v647 = vld [vmem:[%s481 + $0x1c] sm:$0x1]
        %s648 = scalar_lea.vmem [#allocation2], 32
        %649 = vst.msk [vmem:[%s648] sm:$0xf] %vm572, %v640
        %v650 = vld [vmem:[%s648 + $0x4] sm:$0x1]
        %v651 = vsel %vm576, %v641, %v650
        %652 = vst [vmem:[%s648 + $0x4] sm:$0x1] %v651
        %653 = vst.msk [vmem:[%s648 + $0x28] sm:$0xf] %vm572, %v642
        %v654 = vld [vmem:[%s648 + $0x2c] sm:$0x1]
        %v655 = vsel %vm576, %v643, %v654
        %656 = vst [vmem:[%s648 + $0x2c] sm:$0x1] %v655
        %657 = vst.msk [vmem:[%s648 + $0x50] sm:$0xf] %vm572, %v644
        %v658 = vld [vmem:[%s648 + $0x54] sm:$0x1]
        %v659 = vsel %vm576, %v645, %v658
        %660 = vst [vmem:[%s648 + $0x54] sm:$0x1] %v659
        %661 = vst.msk [vmem:[%s648 + $0x78] sm:$0xf] %vm572, %v646
        %v662 = vld [vmem:[%s648 + $0x7c] sm:$0x1]
        %v663 = vsel %vm576, %v647, %v662
        %664 = vst [vmem:[%s648 + $0x7c] sm:$0x1] %v663
        %v665 = vld [vmem:[#allocation2] sm:$0xf]
        %v666 = vld [vmem:[#allocation2 + $0x8] sm:$0xf]
        %v667 = vld [vmem:[#allocation2 + $0x10] sm:$0xf]
        %v668 = vld [vmem:[#allocation2 + $0x18] sm:$0xf]
        %v669 = vld [vmem:[%s2] sm:$0x3]
        %s670 = scalar_lea.vmem [#allocation2], 40
        %v671 = vld [vmem:[%s670] sm:$0xf]
        %v672 = vld [vmem:[%s670 + $0x8] sm:$0xf]
        %v673 = vld [vmem:[%s670 + $0x10] sm:$0xf]
        %v674 = vld [vmem:[%s670 + $0x18] sm:$0xf]
        %s675 = scalar_lea.vmem %s2, 2
        %v676 = vld [vmem:[%s675] sm:$0x3]
        %v681 = vunpack.c.l.b16 %v671
        %v682 = vunpack.c.l.b16 %v672
        %v683 = vunpack.c.l.b16 %v673
        %v684 = vunpack.c.l.b16 %v674
        %v685 = vpack.c.b16 %v682, %v681
        %v686 = vpack.c.b16 %v684, %v683
        %vm687 = vcmask 31744
        %v689 = vsel %vm687, %v685, 0
        %v692 = vsel %vm687, %v686, 0
        %vm694 = vcmask 1041408
        %v696 = vsel %vm694, %v676, 0
        %698 = vmatprep.subr.bf16.mxu0 0
        %699 = vmatpush1.bf16.msra.mxu0 0
        %700 = vmatprep.subr.bf16.mxu0 0
        %701 = vmatpush1.bf16.msra.mxu0 0
        %702 = vmatprep.subr.bf16.mxu0 0
        %703 = vmatpush1.bf16.msra.mxu0 0
        %704 = vmatprep.subr.bf16.mxu0 0
        %705 = vmatpush1.bf16.msra.mxu0 0
        %706 = vmatprep.subr.bf16.mxu0 0
        %707 = vmatpush1.bf16.msra.mxu0 0
        %708 = vmatprep.subr.bf16.mxu0 0
        %709 = vmatpush1.bf16.msra.mxu0 0
        %710 = vmatprep.subr.bf16.mxu0 0
        %711 = vmatpush1.bf16.msra.mxu0 0
        %712 = vmatprep.subr.bf16.mxu0 0
        %713 = vmatpush1.bf16.msra.mxu0 %v696
        %714 = vmatprep.subr.bf16.mxu0 0
        %715 = vmatpush2.bf16.msra.mxu0 0
        %716 = vmatprep.subr.bf16.mxu0 0
        %717 = vmatpush2.bf16.msra.mxu0 0
        %718 = vmatprep.subr.bf16.mxu0 0
        %719 = vmatpush2.bf16.msra.mxu0 0
        %720 = vmatprep.subr.bf16.mxu0 0
        %721 = vmatpush2.bf16.msra.mxu0 0
        %722 = vmatprep.subr.bf16.mxu0 0
        %723 = vmatpush2.bf16.msra.mxu0 0
        %724 = vmatprep.subr.bf16.mxu0 0
        %725 = vmatpush2.bf16.msra.mxu0 0
        %726 = vmatprep.subr.bf16.mxu0 0
        %727 = vmatpush2.bf16.msra.mxu0 0
        %728 = vmatprep.subr.bf16.mxu0 0
        %729 = vmatpush2.bf16.msra.mxu0 0
        %730 = vmatprep.mubr.bf16.mxu0 0
        %731 = vmatmul.mubr.bf16.gmra.mxu0 %v689
        %v732 = vpop.f32.mrf.mxu0
        %v733 = vadd.f32 0.0, %v732
        %v734 = vpop.f32.mrf.mxu0
        %v735 = vpop.f32.mrf.mxu0
        %v736 = vadd.f32 0.0, %v735
        %v737 = vpop.f32.mrf.mxu0
        %738 = vmatprep.mubr.bf16.mxu0 0
        %739 = vmatmul.mubr.bf16.gmra.mxu0 %v692
        %v740 = vpop.f32.mrf.mxu0
        %v741 = vadd.f32 0.0, %v740
        %v742 = vpop.f32.mrf.mxu0
        %v743 = vpop.f32.mrf.mxu0
        %v744 = vadd.f32 0.0, %v743
        %v745 = vpop.f32.mrf.mxu0
        %746 = vdwg.mxu0
        %v751 = vunpack.c.l.b16 %v665
        %v752 = vunpack.c.l.b16 %v666
        %v753 = vunpack.c.l.b16 %v667
        %v754 = vunpack.c.l.b16 %v668
        %v755 = vpack.c.b16 %v752, %v751
        %v756 = vpack.c.b16 %v754, %v753
        %v758 = vsel %vm687, %v755, 0
        %v761 = vsel %vm687, %v756, 0
        %v764 = vsel %vm694, %v669, 0
        %766 = vmatprep.subr.bf16.mxu0 0
        %767 = vmatpush1.bf16.msra.mxu0 0
        %768 = vmatprep.subr.bf16.mxu0 0
        %769 = vmatpush1.bf16.msra.mxu0 0
        %770 = vmatprep.subr.bf16.mxu0 0
        %771 = vmatpush1.bf16.msra.mxu0 0
        %772 = vmatprep.subr.bf16.mxu0 0
        %773 = vmatpush1.bf16.msra.mxu0 0
        %774 = vmatprep.subr.bf16.mxu0 0
        %775 = vmatpush1.bf16.msra.mxu0 0
        %776 = vmatprep.subr.bf16.mxu0 0
        %777 = vmatpush1.bf16.msra.mxu0 0
        %778 = vmatprep.subr.bf16.mxu0 0
        %779 = vmatpush1.bf16.msra.mxu0 0
        %780 = vmatprep.subr.bf16.mxu0 0
        %781 = vmatpush1.bf16.msra.mxu0 %v764
        %782 = vmatprep.subr.bf16.mxu0 0
        %783 = vmatpush2.bf16.msra.mxu0 0
        %784 = vmatprep.subr.bf16.mxu0 0
        %785 = vmatpush2.bf16.msra.mxu0 0
        %786 = vmatprep.subr.bf16.mxu0 0
        %787 = vmatpush2.bf16.msra.mxu0 0
        %788 = vmatprep.subr.bf16.mxu0 0
        %789 = vmatpush2.bf16.msra.mxu0 0
        %790 = vmatprep.subr.bf16.mxu0 0
        %791 = vmatpush2.bf16.msra.mxu0 0
        %792 = vmatprep.subr.bf16.mxu0 0
        %793 = vmatpush2.bf16.msra.mxu0 0
        %794 = vmatprep.subr.bf16.mxu0 0
        %795 = vmatpush2.bf16.msra.mxu0 0
        %796 = vmatprep.subr.bf16.mxu0 0
        %797 = vmatpush2.bf16.msra.mxu0 0
        %798 = vmatprep.mubr.bf16.mxu0 0
        %799 = vmatmul.mubr.bf16.gmra.mxu0 %v758
        %v800 = vpop.f32.mrf.mxu0
        %v801 = vadd.f32 %v733, %v800
        %v802 = vpop.f32.mrf.mxu0
        %v803 = vpop.f32.mrf.mxu0
        %v804 = vadd.f32 %v736, %v803
        %v805 = vpop.f32.mrf.mxu0
        %806 = vmatprep.mubr.bf16.mxu0 0
        %807 = vmatmul.mubr.bf16.gmra.mxu0 %v761
        %v808 = vpop.f32.mrf.mxu0
        %v809 = vadd.f32 %v741, %v808
        %v810 = vpop.f32.mrf.mxu0
        %v811 = vpop.f32.mrf.mxu0
        %v812 = vadd.f32 %v744, %v811
        %v813 = vpop.f32.mrf.mxu0
        %814 = vdwg.mxu0
        %v815 = vld [vmem:[#allocation2] sm:$0xf]
        %v816 = vld [vmem:[#allocation2 + $0x4] sm:$0x1]
        %v817 = vld [vmem:[#allocation2 + $0x8] sm:$0xf]
        %v818 = vld [vmem:[#allocation2 + $0xc] sm:$0x1]
        %v819 = vld [vmem:[#allocation2 + $0x10] sm:$0xf]
        %v820 = vld [vmem:[#allocation2 + $0x14] sm:$0x1]
        %v821 = vld [vmem:[#allocation2 + $0x18] sm:$0xf]
        %v822 = vld [vmem:[#allocation2 + $0x1c] sm:$0x1]
        %vm823 = vsmask.f32 3328
        %vm824 = vsmask.f32 7440
        %vm825 = vmor %vm823, %vm824
        %v827 = vshrl.u32 %v815, 16
        %v829 = vrot.slane %v827, 4
        %v830 = vshll.u32 %v815, 16
        %v832 = vrot.slane %v830, 5
        %v833 = vor.u32 %v829, %v832
        %v834 = vrot.slane %v833, 4
        %v836 = vshll.u32 %v816, 16
        %v838 = vrot.slane %v836, 5
        %v839 = vsel %vm825, %v834, %v838
        %v841 = vshrl.u32 %v817, 16
        %v843 = vrot.slane %v841, 4
        %v844 = vshll.u32 %v817, 16
        %v846 = vrot.slane %v844, 5
        %v847 = vor.u32 %v843, %v846
        %v848 = vrot.slane %v847, 4
        %v850 = vshll.u32 %v818, 16
        %v852 = vrot.slane %v850, 5
        %v853 = vsel %vm825, %v848, %v852
        %v855 = vshrl.u32 %v819, 16
        %v857 = vrot.slane %v855, 4
        %v858 = vshll.u32 %v819, 16
        %v860 = vrot.slane %v858, 5
        %v861 = vor.u32 %v857, %v860
        %v862 = vrot.slane %v861, 4
        %v864 = vshll.u32 %v820, 16
        %v866 = vrot.slane %v864, 5
        %v867 = vsel %vm825, %v862, %v866
        %v869 = vshrl.u32 %v821, 16
        %v871 = vrot.slane %v869, 4
        %v872 = vshll.u32 %v821, 16
        %v874 = vrot.slane %v872, 5
        %v875 = vor.u32 %v871, %v874
        %v876 = vrot.slane %v875, 4
        %v878 = vshll.u32 %v822, 16
        %v880 = vrot.slane %v878, 5
        %v881 = vsel %vm825, %v876, %v880
        %s882 = scalar_lea.vmem %s2, 4
        %v883 = vld [vmem:[%s882] sm:$0x3]
        %v884 = vunpack.c.l.b16 %v839
        %v885 = vunpack.c.l.b16 %v853
        %v886 = vunpack.c.l.b16 %v867
        %v887 = vunpack.c.l.b16 %v881
        %v888 = vpack.c.b16 %v885, %v884
        %v889 = vpack.c.b16 %v887, %v886
        %v891 = vsel %vm687, %v888, 0
        %v894 = vsel %vm687, %v889, 0
        %v897 = vsel %vm694, %v883, 0
        %899 = vmatprep.subr.bf16.mxu0 0
        %900 = vmatpush1.bf16.msra.mxu0 0
        %901 = vmatprep.subr.bf16.mxu0 0
        %902 = vmatpush1.bf16.msra.mxu0 0
        %903 = vmatprep.subr.bf16.mxu0 0
        %904 = vmatpush1.bf16.msra.mxu0 0
        %905 = vmatprep.subr.bf16.mxu0 0
        %906 = vmatpush1.bf16.msra.mxu0 0
        %907 = vmatprep.subr.bf16.mxu0 0
        %908 = vmatpush1.bf16.msra.mxu0 0
        %909 = vmatprep.subr.bf16.mxu0 0
        %910 = vmatpush1.bf16.msra.mxu0 0
        %911 = vmatprep.subr.bf16.mxu0 0
        %912 = vmatpush1.bf16.msra.mxu0 0
        %913 = vmatprep.subr.bf16.mxu0 0
        %914 = vmatpush1.bf16.msra.mxu0 %v897
        %915 = vmatprep.subr.bf16.mxu0 0
        %916 = vmatpush2.bf16.msra.mxu0 0
        %917 = vmatprep.subr.bf16.mxu0 0
        %918 = vmatpush2.bf16.msra.mxu0 0
        %919 = vmatprep.subr.bf16.mxu0 0
        %920 = vmatpush2.bf16.msra.mxu0 0
        %921 = vmatprep.subr.bf16.mxu0 0
        %922 = vmatpush2.bf16.msra.mxu0 0
        %923 = vmatprep.subr.bf16.mxu0 0
        %924 = vmatpush2.bf16.msra.mxu0 0
        %925 = vmatprep.subr.bf16.mxu0 0
        %926 = vmatpush2.bf16.msra.mxu0 0
        %927 = vmatprep.subr.bf16.mxu0 0
        %928 = vmatpush2.bf16.msra.mxu0 0
        %929 = vmatprep.subr.bf16.mxu0 0
        %930 = vmatpush2.bf16.msra.mxu0 0
        %931 = vmatprep.mubr.bf16.mxu0 0
        %932 = vmatmul.mubr.bf16.gmra.mxu0 %v891
        %v933 = vpop.f32.mrf.mxu0
        %v934 = vadd.f32 0.0, %v933
        %v935 = vpop.f32.mrf.mxu0
        %v936 = vpop.f32.mrf.mxu0
        %v937 = vadd.f32 0.0, %v936
        %v938 = vpop.f32.mrf.mxu0
        %939 = vmatprep.mubr.bf16.mxu0 0
        %940 = vmatmul.mubr.bf16.gmra.mxu0 %v894
        %v941 = vpop.f32.mrf.mxu0
        %v942 = vadd.f32 0.0, %v941
        %v943 = vpop.f32.mrf.mxu0
        %v944 = vpop.f32.mrf.mxu0
        %v945 = vadd.f32 0.0, %v944
        %v946 = vpop.f32.mrf.mxu0
        %947 = vdwg.mxu0
        %v948 = vadd.f32 %v801, %v934
        %v949 = vadd.f32 %v804, %v937
        %v950 = vadd.f32 %v809, %v942
        %v951 = vadd.f32 %v812, %v945
        %s952 = scalar_lea.vmem [#allocation2], 80
        %v953 = vld [vmem:[%s952] sm:$0xf]
        %v954 = vld [vmem:[%s952 + $0x8] sm:$0xf]
        %v955 = vld [vmem:[%s952 + $0x10] sm:$0xf]
        %v956 = vld [vmem:[%s952 + $0x18] sm:$0xf]
        %s957 = scalar_lea.vmem %s2, 6
        %v958 = vld [vmem:[%s957] sm:$0x3]
        %v963 = vunpack.c.l.b16 %v953
        %v964 = vunpack.c.l.b16 %v954
        %v965 = vunpack.c.l.b16 %v955
        %v966 = vunpack.c.l.b16 %v956
        %v967 = vpack.c.b16 %v964, %v963
        %v968 = vpack.c.b16 %v966, %v965
        %v970 = vsel %vm687, %v967, 0
        %v973 = vsel %vm687, %v968, 0
        %v976 = vsel %vm694, %v958, 0
        %978 = vmatprep.subr.bf16.mxu0 0
        %979 = vmatpush1.bf16.msra.mxu0 0
        %980 = vmatprep.subr.bf16.mxu0 0
        %981 = vmatpush1.bf16.msra.mxu0 0
        %982 = vmatprep.subr.bf16.mxu0 0
        %983 = vmatpush1.bf16.msra.mxu0 0
        %984 = vmatprep.subr.bf16.mxu0 0
        %985 = vmatpush1.bf16.msra.mxu0 0
        %986 = vmatprep.subr.bf16.mxu0 0
        %987 = vmatpush1.bf16.msra.mxu0 0
        %988 = vmatprep.subr.bf16.mxu0 0
        %989 = vmatpush1.bf16.msra.mxu0 0
        %990 = vmatprep.subr.bf16.mxu0 0
        %991 = vmatpush1.bf16.msra.mxu0 0
        %992 = vmatprep.subr.bf16.mxu0 0
        %993 = vmatpush1.bf16.msra.mxu0 %v976
        %994 = vmatprep.subr.bf16.mxu0 0
        %995 = vmatpush2.bf16.msra.mxu0 0
        %996 = vmatprep.subr.bf16.mxu0 0
        %997 = vmatpush2.bf16.msra.mxu0 0
        %998 = vmatprep.subr.bf16.mxu0 0
        %999 = vmatpush2.bf16.msra.mxu0 0
        %1000 = vmatprep.subr.bf16.mxu0 0
        %1001 = vmatpush2.bf16.msra.mxu0 0
        %1002 = vmatprep.subr.bf16.mxu0 0
        %1003 = vmatpush2.bf16.msra.mxu0 0
        %1004 = vmatprep.subr.bf16.mxu0 0
        %1005 = vmatpush2.bf16.msra.mxu0 0
        %1006 = vmatprep.subr.bf16.mxu0 0
        %1007 = vmatpush2.bf16.msra.mxu0 0
        %1008 = vmatprep.subr.bf16.mxu0 0
        %1009 = vmatpush2.bf16.msra.mxu0 0
        %1010 = vmatprep.mubr.bf16.mxu0 0
        %1011 = vmatmul.mubr.bf16.gmra.mxu0 %v970
        %v1012 = vpop.f32.mrf.mxu0
        %v1013 = vadd.f32 0.0, %v1012
        %v1014 = vpop.f32.mrf.mxu0
        %v1015 = vpop.f32.mrf.mxu0
        %v1016 = vadd.f32 0.0, %v1015
        %v1017 = vpop.f32.mrf.mxu0
        %1018 = vmatprep.mubr.bf16.mxu0 0
        %1019 = vmatmul.mubr.bf16.gmra.mxu0 %v973
        %v1020 = vpop.f32.mrf.mxu0
        %v1021 = vadd.f32 0.0, %v1020
        %v1022 = vpop.f32.mrf.mxu0
        %v1023 = vpop.f32.mrf.mxu0
        %v1024 = vadd.f32 0.0, %v1023
        %v1025 = vpop.f32.mrf.mxu0
        %1026 = vdwg.mxu0
        %v1027 = vadd.f32 %v948, %v1013
        %v1028 = vadd.f32 %v949, %v1016
        %v1029 = vadd.f32 %v950, %v1021
        %v1030 = vadd.f32 %v951, %v1024
        %s1031 = scalar_lea.vmem [#allocation2], 120
        %v1032 = vld [vmem:[%s1031] sm:$0xf]
        %v1033 = vld [vmem:[%s1031 + $0x8] sm:$0xf]
        %v1034 = vld [vmem:[%s1031 + $0x10] sm:$0xf]
        %v1035 = vld [vmem:[%s1031 + $0x18] sm:$0xf]
        %s1036 = scalar_lea.vmem %s2, 8
        %v1037 = vld [vmem:[%s1036] sm:$0x3]
        %v1042 = vunpack.c.l.b16 %v1032
        %v1043 = vunpack.c.l.b16 %v1033
        %v1044 = vunpack.c.l.b16 %v1034
        %v1045 = vunpack.c.l.b16 %v1035
        %v1046 = vpack.c.b16 %v1043, %v1042
        %v1047 = vpack.c.b16 %v1045, %v1044
        %v1049 = vsel %vm687, %v1046, 0
        %v1052 = vsel %vm687, %v1047, 0
        %v1055 = vsel %vm694, %v1037, 0
        %1057 = vmatprep.subr.bf16.mxu0 0
        %1058 = vmatpush1.bf16.msra.mxu0 0
        %1059 = vmatprep.subr.bf16.mxu0 0
        %1060 = vmatpush1.bf16.msra.mxu0 0
        %1061 = vmatprep.subr.bf16.mxu0 0
        %1062 = vmatpush1.bf16.msra.mxu0 0
        %1063 = vmatprep.subr.bf16.mxu0 0
        %1064 = vmatpush1.bf16.msra.mxu0 0
        %1065 = vmatprep.subr.bf16.mxu0 0
        %1066 = vmatpush1.bf16.msra.mxu0 0
        %1067 = vmatprep.subr.bf16.mxu0 0
        %1068 = vmatpush1.bf16.msra.mxu0 0
        %1069 = vmatprep.subr.bf16.mxu0 0
        %1070 = vmatpush1.bf16.msra.mxu0 0
        %1071 = vmatprep.subr.bf16.mxu0 0
        %1072 = vmatpush1.bf16.msra.mxu0 %v1055
        %1073 = vmatprep.subr.bf16.mxu0 0
        %1074 = vmatpush2.bf16.msra.mxu0 0
        %1075 = vmatprep.subr.bf16.mxu0 0
        %1076 = vmatpush2.bf16.msra.mxu0 0
        %1077 = vmatprep.subr.bf16.mxu0 0
        %1078 = vmatpush2.bf16.msra.mxu0 0
        %1079 = vmatprep.subr.bf16.mxu0 0
        %1080 = vmatpush2.bf16.msra.mxu0 0
        %1081 = vmatprep.subr.bf16.mxu0 0
        %1082 = vmatpush2.bf16.msra.mxu0 0
        %1083 = vmatprep.subr.bf16.mxu0 0
        %1084 = vmatpush2.bf16.msra.mxu0 0
        %1085 = vmatprep.subr.bf16.mxu0 0
        %1086 = vmatpush2.bf16.msra.mxu0 0
        %1087 = vmatprep.subr.bf16.mxu0 0
        %1088 = vmatpush2.bf16.msra.mxu0 0
        %1089 = vmatprep.mubr.bf16.mxu0 0
        %1090 = vmatmul.mubr.bf16.gmra.mxu0 %v1049
        %v1091 = vpop.f32.mrf.mxu0
        %v1092 = vadd.f32 0.0, %v1091
        %v1093 = vpop.f32.mrf.mxu0
        %v1094 = vpop.f32.mrf.mxu0
        %v1095 = vadd.f32 0.0, %v1094
        %v1096 = vpop.f32.mrf.mxu0
        %1097 = vmatprep.mubr.bf16.mxu0 0
        %1098 = vmatmul.mubr.bf16.gmra.mxu0 %v1052
        %v1099 = vpop.f32.mrf.mxu0
        %v1100 = vadd.f32 0.0, %v1099
        %v1101 = vpop.f32.mrf.mxu0
        %v1102 = vpop.f32.mrf.mxu0
        %v1103 = vadd.f32 0.0, %v1102
        %v1104 = vpop.f32.mrf.mxu0
        %1105 = vdwg.mxu0
        %v1106 = vadd.f32 %v1027, %v1092
        %v1107 = vadd.f32 %v1028, %v1095
        %v1108 = vadd.f32 %v1029, %v1100
        %v1109 = vadd.f32 %v1030, %v1103
        %v1110 = vld [vmem:[%s952] sm:$0xf]
        %v1111 = vld [vmem:[%s952 + $0x4] sm:$0x1]
        %v1112 = vld [vmem:[%s952 + $0x8] sm:$0xf]
        %v1113 = vld [vmem:[%s952 + $0xc] sm:$0x1]
        %v1114 = vld [vmem:[%s952 + $0x10] sm:$0xf]
        %v1115 = vld [vmem:[%s952 + $0x14] sm:$0x1]
        %v1116 = vld [vmem:[%s952 + $0x18] sm:$0xf]
        %v1117 = vld [vmem:[%s952 + $0x1c] sm:$0x1]
        %v1119 = vshrl.u32 %v1110, 16
        %v1121 = vrot.slane %v1119, 4
        %v1122 = vshll.u32 %v1110, 16
        %v1124 = vrot.slane %v1122, 5
        %v1125 = vor.u32 %v1121, %v1124
        %v1126 = vrot.slane %v1125, 4
        %v1128 = vshll.u32 %v1111, 16
        %v1130 = vrot.slane %v1128, 5
        %v1131 = vsel %vm825, %v1126, %v1130
        %v1133 = vshrl.u32 %v1112, 16
        %v1135 = vrot.slane %v1133, 4
        %v1136 = vshll.u32 %v1112, 16
        %v1138 = vrot.slane %v1136, 5
        %v1139 = vor.u32 %v1135, %v1138
        %v1140 = vrot.slane %v1139, 4
        %v1142 = vshll.u32 %v1113, 16
        %v1144 = vrot.slane %v1142, 5
        %v1145 = vsel %vm825, %v1140, %v1144
        %v1147 = vshrl.u32 %v1114, 16
        %v1149 = vrot.slane %v1147, 4
        %v1150 = vshll.u32 %v1114, 16
        %v1152 = vrot.slane %v1150, 5
        %v1153 = vor.u32 %v1149, %v1152
        %v1154 = vrot.slane %v1153, 4
        %v1156 = vshll.u32 %v1115, 16
        %v1158 = vrot.slane %v1156, 5
        %v1159 = vsel %vm825, %v1154, %v1158
        %v1161 = vshrl.u32 %v1116, 16
        %v1163 = vrot.slane %v1161, 4
        %v1164 = vshll.u32 %v1116, 16
        %v1166 = vrot.slane %v1164, 5
        %v1167 = vor.u32 %v1163, %v1166
        %v1168 = vrot.slane %v1167, 4
        %v1170 = vshll.u32 %v1117, 16
        %v1172 = vrot.slane %v1170, 5
        %v1173 = vsel %vm825, %v1168, %v1172
        %s1174 = scalar_lea.vmem %s2, 10
        %v1175 = vld [vmem:[%s1174] sm:$0x3]
        %v1176 = vunpack.c.l.b16 %v1131
        %v1177 = vunpack.c.l.b16 %v1145
        %v1178 = vunpack.c.l.b16 %v1159
        %v1179 = vunpack.c.l.b16 %v1173
        %v1180 = vpack.c.b16 %v1177, %v1176
        %v1181 = vpack.c.b16 %v1179, %v1178
        %v1183 = vsel %vm687, %v1180, 0
        %v1186 = vsel %vm687, %v1181, 0
        %v1189 = vsel %vm694, %v1175, 0
        %1191 = vmatprep.subr.bf16.mxu0 0
        %1192 = vmatpush1.bf16.msra.mxu0 0
        %1193 = vmatprep.subr.bf16.mxu0 0
        %1194 = vmatpush1.bf16.msra.mxu0 0
        %1195 = vmatprep.subr.bf16.mxu0 0
        %1196 = vmatpush1.bf16.msra.mxu0 0
        %1197 = vmatprep.subr.bf16.mxu0 0
        %1198 = vmatpush1.bf16.msra.mxu0 0
        %1199 = vmatprep.subr.bf16.mxu0 0
        %1200 = vmatpush1.bf16.msra.mxu0 0
        %1201 = vmatprep.subr.bf16.mxu0 0
        %1202 = vmatpush1.bf16.msra.mxu0 0
        %1203 = vmatprep.subr.bf16.mxu0 0
        %1204 = vmatpush1.bf16.msra.mxu0 0
        %1205 = vmatprep.subr.bf16.mxu0 0
        %1206 = vmatpush1.bf16.msra.mxu0 %v1189
        %1207 = vmatprep.subr.bf16.mxu0 0
        %1208 = vmatpush2.bf16.msra.mxu0 0
        %1209 = vmatprep.subr.bf16.mxu0 0
        %1210 = vmatpush2.bf16.msra.mxu0 0
        %1211 = vmatprep.subr.bf16.mxu0 0
        %1212 = vmatpush2.bf16.msra.mxu0 0
        %1213 = vmatprep.subr.bf16.mxu0 0
        %1214 = vmatpush2.bf16.msra.mxu0 0
        %1215 = vmatprep.subr.bf16.mxu0 0
        %1216 = vmatpush2.bf16.msra.mxu0 0
        %1217 = vmatprep.subr.bf16.mxu0 0
        %1218 = vmatpush2.bf16.msra.mxu0 0
        %1219 = vmatprep.subr.bf16.mxu0 0
        %1220 = vmatpush2.bf16.msra.mxu0 0
        %1221 = vmatprep.subr.bf16.mxu0 0
        %1222 = vmatpush2.bf16.msra.mxu0 0
        %1223 = vmatprep.mubr.bf16.mxu0 0
        %1224 = vmatmul.mubr.bf16.gmra.mxu0 %v1183
        %v1225 = vpop.f32.mrf.mxu0
        %v1226 = vadd.f32 0.0, %v1225
        %v1227 = vpop.f32.mrf.mxu0
        %v1228 = vpop.f32.mrf.mxu0
        %v1229 = vadd.f32 0.0, %v1228
        %v1230 = vpop.f32.mrf.mxu0
        %1231 = vmatprep.mubr.bf16.mxu0 0
        %1232 = vmatmul.mubr.bf16.gmra.mxu0 %v1186
        %v1233 = vpop.f32.mrf.mxu0
        %v1234 = vadd.f32 0.0, %v1233
        %v1235 = vpop.f32.mrf.mxu0
        %v1236 = vpop.f32.mrf.mxu0
        %v1237 = vadd.f32 0.0, %v1236
        %v1238 = vpop.f32.mrf.mxu0
        %1239 = vdwg.mxu0
        %v1240 = vadd.f32 %v1106, %v1226
        %v1241 = vadd.f32 %v1107, %v1229
        %v1242 = vadd.f32 %v1108, %v1234
        %v1243 = vadd.f32 %v1109, %v1237
        %s1244 = scalar_lea.vmem [#allocation2], 8
        %v1245 = vld [vmem:[%s1244] sm:$0xf]
        %v1246 = vld [vmem:[%s1244 + $0x8] sm:$0xf]
        %v1247 = vld [vmem:[%s1244 + $0x10] sm:$0xf]
        %v1248 = vld [vmem:[%s1244 + $0x18] sm:$0xf]
        %s1249 = scalar_lea.vmem %s2, 12
        %v1250 = vld [vmem:[%s1249] sm:$0x3]
        %v1255 = vunpack.c.l.b16 %v1245
        %v1256 = vunpack.c.l.b16 %v1246
        %v1257 = vunpack.c.l.b16 %v1247
        %v1258 = vunpack.c.l.b16 %v1248
        %v1259 = vpack.c.b16 %v1256, %v1255
        %v1260 = vpack.c.b16 %v1258, %v1257
        %v1262 = vsel %vm687, %v1259, 0
        %v1265 = vsel %vm687, %v1260, 0
        %v1268 = vsel %vm694, %v1250, 0
        %1270 = vmatprep.subr.bf16.mxu0 0
        %1271 = vmatpush1.bf16.msra.mxu0 0
        %1272 = vmatprep.subr.bf16.mxu0 0
        %1273 = vmatpush1.bf16.msra.mxu0 0
        %1274 = vmatprep.subr.bf16.mxu0 0
        %1275 = vmatpush1.bf16.msra.mxu0 0
        %1276 = vmatprep.subr.bf16.mxu0 0
        %1277 = vmatpush1.bf16.msra.mxu0 0
        %1278 = vmatprep.subr.bf16.mxu0 0
        %1279 = vmatpush1.bf16.msra.mxu0 0
        %1280 = vmatprep.subr.bf16.mxu0 0
        %1281 = vmatpush1.bf16.msra.mxu0 0
        %1282 = vmatprep.subr.bf16.mxu0 0
        %1283 = vmatpush1.bf16.msra.mxu0 0
        %1284 = vmatprep.subr.bf16.mxu0 0
        %1285 = vmatpush1.bf16.msra.mxu0 %v1268
        %1286 = vmatprep.subr.bf16.mxu0 0
        %1287 = vmatpush2.bf16.msra.mxu0 0
        %1288 = vmatprep.subr.bf16.mxu0 0
        %1289 = vmatpush2.bf16.msra.mxu0 0
        %1290 = vmatprep.subr.bf16.mxu0 0
        %1291 = vmatpush2.bf16.msra.mxu0 0
        %1292 = vmatprep.subr.bf16.mxu0 0
        %1293 = vmatpush2.bf16.msra.mxu0 0
        %1294 = vmatprep.subr.bf16.mxu0 0
        %1295 = vmatpush2.bf16.msra.mxu0 0
        %1296 = vmatprep.subr.bf16.mxu0 0
        %1297 = vmatpush2.bf16.msra.mxu0 0
        %1298 = vmatprep.subr.bf16.mxu0 0
        %1299 = vmatpush2.bf16.msra.mxu0 0
        %1300 = vmatprep.subr.bf16.mxu0 0
        %1301 = vmatpush2.bf16.msra.mxu0 0
        %1302 = vmatprep.mubr.bf16.mxu0 0
        %1303 = vmatmul.mubr.bf16.gmra.mxu0 %v1262
        %v1304 = vpop.f32.mrf.mxu0
        %v1305 = vadd.f32 0.0, %v1304
        %v1306 = vpop.f32.mrf.mxu0
        %v1307 = vpop.f32.mrf.mxu0
        %v1308 = vadd.f32 0.0, %v1307
        %v1309 = vpop.f32.mrf.mxu0
        %1310 = vmatprep.mubr.bf16.mxu0 0
        %1311 = vmatmul.mubr.bf16.gmra.mxu0 %v1265
        %v1312 = vpop.f32.mrf.mxu0
        %v1313 = vadd.f32 0.0, %v1312
        %v1314 = vpop.f32.mrf.mxu0
        %v1315 = vpop.f32.mrf.mxu0
        %v1316 = vadd.f32 0.0, %v1315
        %v1317 = vpop.f32.mrf.mxu0
        %1318 = vdwg.mxu0
        %v1319 = vadd.f32 %v1240, %v1305
        %v1320 = vadd.f32 %v1241, %v1308
        %v1321 = vadd.f32 %v1242, %v1313
        %v1322 = vadd.f32 %v1243, %v1316
        %s1323 = scalar_lea.vmem [#allocation2], 48
        %v1324 = vld [vmem:[%s1323] sm:$0xf]
        %v1325 = vld [vmem:[%s1323 + $0x8] sm:$0xf]
        %v1326 = vld [vmem:[%s1323 + $0x10] sm:$0xf]
        %v1327 = vld [vmem:[%s1323 + $0x18] sm:$0xf]
        %s1328 = scalar_lea.vmem %s2, 14
        %v1329 = vld [vmem:[%s1328] sm:$0x3]
        %v1334 = vunpack.c.l.b16 %v1324
        %v1335 = vunpack.c.l.b16 %v1325
        %v1336 = vunpack.c.l.b16 %v1326
        %v1337 = vunpack.c.l.b16 %v1327
        %v1338 = vpack.c.b16 %v1335, %v1334
        %v1339 = vpack.c.b16 %v1337, %v1336
        %v1341 = vsel %vm687, %v1338, 0
        %v1344 = vsel %vm687, %v1339, 0
        %v1347 = vsel %vm694, %v1329, 0
        %1349 = vmatprep.subr.bf16.mxu0 0
        %1350 = vmatpush1.bf16.msra.mxu0 0
        %1351 = vmatprep.subr.bf16.mxu0 0
        %1352 = vmatpush1.bf16.msra.mxu0 0
        %1353 = vmatprep.subr.bf16.mxu0 0
        %1354 = vmatpush1.bf16.msra.mxu0 0
        %1355 = vmatprep.subr.bf16.mxu0 0
        %1356 = vmatpush1.bf16.msra.mxu0 0
        %1357 = vmatprep.subr.bf16.mxu0 0
        %1358 = vmatpush1.bf16.msra.mxu0 0
        %1359 = vmatprep.subr.bf16.mxu0 0
        %1360 = vmatpush1.bf16.msra.mxu0 0
        %1361 = vmatprep.subr.bf16.mxu0 0
        %1362 = vmatpush1.bf16.msra.mxu0 0
        %1363 = vmatprep.subr.bf16.mxu0 0
        %1364 = vmatpush1.bf16.msra.mxu0 %v1347
        %1365 = vmatprep.subr.bf16.mxu0 0
        %1366 = vmatpush2.bf16.msra.mxu0 0
        %1367 = vmatprep.subr.bf16.mxu0 0
        %1368 = vmatpush2.bf16.msra.mxu0 0
        %1369 = vmatprep.subr.bf16.mxu0 0
        %1370 = vmatpush2.bf16.msra.mxu0 0
        %1371 = vmatprep.subr.bf16.mxu0 0
        %1372 = vmatpush2.bf16.msra.mxu0 0
        %1373 = vmatprep.subr.bf16.mxu0 0
        %1374 = vmatpush2.bf16.msra.mxu0 0
        %1375 = vmatprep.subr.bf16.mxu0 0
        %1376 = vmatpush2.bf16.msra.mxu0 0
        %1377 = vmatprep.subr.bf16.mxu0 0
        %1378 = vmatpush2.bf16.msra.mxu0 0
        %1379 = vmatprep.subr.bf16.mxu0 0
        %1380 = vmatpush2.bf16.msra.mxu0 0
        %1381 = vmatprep.mubr.bf16.mxu0 0
        %1382 = vmatmul.mubr.bf16.gmra.mxu0 %v1341
        %v1383 = vpop.f32.mrf.mxu0
        %v1384 = vadd.f32 0.0, %v1383
        %v1385 = vpop.f32.mrf.mxu0
        %v1386 = vpop.f32.mrf.mxu0
        %v1387 = vadd.f32 0.0, %v1386
        %v1388 = vpop.f32.mrf.mxu0
        %1389 = vmatprep.mubr.bf16.mxu0 0
        %1390 = vmatmul.mubr.bf16.gmra.mxu0 %v1344
        %v1391 = vpop.f32.mrf.mxu0
        %v1392 = vadd.f32 0.0, %v1391
        %v1393 = vpop.f32.mrf.mxu0
        %v1394 = vpop.f32.mrf.mxu0
        %v1395 = vadd.f32 0.0, %v1394
        %v1396 = vpop.f32.mrf.mxu0
        %1397 = vdwg.mxu0
        %v1398 = vadd.f32 %v1319, %v1384
        %v1399 = vadd.f32 %v1320, %v1387
        %v1400 = vadd.f32 %v1321, %v1392
        %v1401 = vadd.f32 %v1322, %v1395
        %v1402 = vld [vmem:[%s1244] sm:$0xf]
        %v1403 = vld [vmem:[%s1244 + $0x4] sm:$0x1]
        %v1404 = vld [vmem:[%s1244 + $0x8] sm:$0xf]
        %v1405 = vld [vmem:[%s1244 + $0xc] sm:$0x1]
        %v1406 = vld [vmem:[%s1244 + $0x10] sm:$0xf]
        %v1407 = vld [vmem:[%s1244 + $0x14] sm:$0x1]
        %v1408 = vld [vmem:[%s1244 + $0x18] sm:$0xf]
        %v1409 = vld [vmem:[%s1244 + $0x1c] sm:$0x1]
        %v1411 = vshrl.u32 %v1402, 16
        %v1413 = vrot.slane %v1411, 4
        %v1414 = vshll.u32 %v1402, 16
        %v1416 = vrot.slane %v1414, 5
        %v1417 = vor.u32 %v1413, %v1416
        %v1418 = vrot.slane %v1417, 4
        %v1420 = vshll.u32 %v1403, 16
        %v1422 = vrot.slane %v1420, 5
        %v1423 = vsel %vm825, %v1418, %v1422
        %v1425 = vshrl.u32 %v1404, 16
        %v1427 = vrot.slane %v1425, 4
        %v1428 = vshll.u32 %v1404, 16
        %v1430 = vrot.slane %v1428, 5
        %v1431 = vor.u32 %v1427, %v1430
        %v1432 = vrot.slane %v1431, 4
        %v1434 = vshll.u32 %v1405, 16
        %v1436 = vrot.slane %v1434, 5
        %v1437 = vsel %vm825, %v1432, %v1436
        %v1439 = vshrl.u32 %v1406, 16
        %v1441 = vrot.slane %v1439, 4
        %v1442 = vshll.u32 %v1406, 16
        %v1444 = vrot.slane %v1442, 5
        %v1445 = vor.u32 %v1441, %v1444
        %v1446 = vrot.slane %v1445, 4
        %v1448 = vshll.u32 %v1407, 16
        %v1450 = vrot.slane %v1448, 5
        %v1451 = vsel %vm825, %v1446, %v1450
        %v1453 = vshrl.u32 %v1408, 16
        %v1455 = vrot.slane %v1453, 4
        %v1456 = vshll.u32 %v1408, 16
        %v1458 = vrot.slane %v1456, 5
        %v1459 = vor.u32 %v1455, %v1458
        %v1460 = vrot.slane %v1459, 4
        %v1462 = vshll.u32 %v1409, 16
        %v1464 = vrot.slane %v1462, 5
        %v1465 = vsel %vm825, %v1460, %v1464
        %s1466 = scalar_lea.vmem %s2, 16
        %v1467 = vld [vmem:[%s1466] sm:$0x3]
        %v1468 = vunpack.c.l.b16 %v1423
        %v1469 = vunpack.c.l.b16 %v1437
        %v1470 = vunpack.c.l.b16 %v1451
        %v1471 = vunpack.c.l.b16 %v1465
        %v1472 = vpack.c.b16 %v1469, %v1468
        %v1473 = vpack.c.b16 %v1471, %v1470
        %v1475 = vsel %vm687, %v1472, 0
        %v1478 = vsel %vm687, %v1473, 0
        %v1481 = vsel %vm694, %v1467, 0
        %1483 = vmatprep.subr.bf16.mxu0 0
        %1484 = vmatpush1.bf16.msra.mxu0 0
        %1485 = vmatprep.subr.bf16.mxu0 0
        %1486 = vmatpush1.bf16.msra.mxu0 0
        %1487 = vmatprep.subr.bf16.mxu0 0
        %1488 = vmatpush1.bf16.msra.mxu0 0
        %1489 = vmatprep.subr.bf16.mxu0 0
        %1490 = vmatpush1.bf16.msra.mxu0 0
        %1491 = vmatprep.subr.bf16.mxu0 0
        %1492 = vmatpush1.bf16.msra.mxu0 0
        %1493 = vmatprep.subr.bf16.mxu0 0
        %1494 = vmatpush1.bf16.msra.mxu0 0
        %1495 = vmatprep.subr.bf16.mxu0 0
        %1496 = vmatpush1.bf16.msra.mxu0 0
        %1497 = vmatprep.subr.bf16.mxu0 0
        %1498 = vmatpush1.bf16.msra.mxu0 %v1481
        %1499 = vmatprep.subr.bf16.mxu0 0
        %1500 = vmatpush2.bf16.msra.mxu0 0
        %1501 = vmatprep.subr.bf16.mxu0 0
        %1502 = vmatpush2.bf16.msra.mxu0 0
        %1503 = vmatprep.subr.bf16.mxu0 0
        %1504 = vmatpush2.bf16.msra.mxu0 0
        %1505 = vmatprep.subr.bf16.mxu0 0
        %1506 = vmatpush2.bf16.msra.mxu0 0
        %1507 = vmatprep.subr.bf16.mxu0 0
        %1508 = vmatpush2.bf16.msra.mxu0 0
        %1509 = vmatprep.subr.bf16.mxu0 0
        %1510 = vmatpush2.bf16.msra.mxu0 0
        %1511 = vmatprep.subr.bf16.mxu0 0
        %1512 = vmatpush2.bf16.msra.mxu0 0
        %1513 = vmatprep.subr.bf16.mxu0 0
        %1514 = vmatpush2.bf16.msra.mxu0 0
        %1515 = vmatprep.mubr.bf16.mxu0 0
        %1516 = vmatmul.mubr.bf16.gmra.mxu0 %v1475
        %v1517 = vpop.f32.mrf.mxu0
        %v1518 = vadd.f32 0.0, %v1517
        %v1519 = vpop.f32.mrf.mxu0
        %v1520 = vpop.f32.mrf.mxu0
        %v1521 = vadd.f32 0.0, %v1520
        %v1522 = vpop.f32.mrf.mxu0
        %1523 = vmatprep.mubr.bf16.mxu0 0
        %1524 = vmatmul.mubr.bf16.gmra.mxu0 %v1478
        %v1525 = vpop.f32.mrf.mxu0
        %v1526 = vadd.f32 0.0, %v1525
        %v1527 = vpop.f32.mrf.mxu0
        %v1528 = vpop.f32.mrf.mxu0
        %v1529 = vadd.f32 0.0, %v1528
        %v1530 = vpop.f32.mrf.mxu0
        %1531 = vdwg.mxu0
        %v1532 = vadd.f32 %v1398, %v1518
        %v1533 = vadd.f32 %v1399, %v1521
        %v1534 = vadd.f32 %v1400, %v1526
        %v1535 = vadd.f32 %v1401, %v1529
        %v1536 = vpack.c.bf16 %v1533, %v1532
        %v1537 = vpack.c.bf16 %v1535, %v1534
        %v1540 = vunpack.c.l.b16 %v1536
        %v1541 = vunpack.c.h.b16 %v1536
        %v1542 = vunpack.c.l.b16 %v1537
        %v1543 = vunpack.c.h.b16 %v1537
        %v1544 = vpack.c.b16 %v1540, %v1540
        %v1545 = vpack.c.b16 %v1541, %v1541
        %v1546 = vpack.c.b16 %v1542, %v1542
        %v1547 = vpack.c.b16 %v1543, %v1543
        %1552 = vst [vmem:[%s531] sm:$0xf] %v1544
        %1553 = vst [vmem:[%s531 + $0x4] sm:$0xf] %v1545
        %1554 = vst [vmem:[%s531 + $0x8] sm:$0xf] %v1546
        %1555 = vst [vmem:[%s531 + $0xc] sm:$0xf] %v1547
        %p1556 = scmp.eq.s32.totalorder %s22, 0
        // Predicated region
        $region115: #{sampler_forward.2} parent=105 // pred_check
          %p1557 = pneg %p1556
        $region116: #{sampler_forward.2} parent=105 // pred_check_branch
          %1559 = sbr.rel (%p1557) target = $region118
        $region117: #{sampler_forward.2} parent=105 // pred_region
          %1560 = vst [vmem:[%s535] sm:$0x1] 0.0
          %1561 = vst [vmem:[%s538] sm:$0x1] 0.0
        $region118: #{sampler_forward.2} parent=105 // pred_fallthru
          _
        %v1562 = vld [vmem:[%s535] sm:$0x1]
        %v1563 = vadd.f32 %v1532, %v1533
        %v1564 = vadd.f32 %v1563, %v1534
        %v1565 = vadd.f32 %v1564, %v1535
        %v1566 = vrot.slane %v1565, 4
        %v1567 = vadd.f32 %v1565, %v1566
        %v1568 = vrot.slane %v1567, 2
        %v1569 = vadd.f32 %v1567, %v1568
        %v1570 = vrot.slane %v1569, 1
        %v1571 = vadd.f32 %v1569, %v1570
        %v1572 = vadd.f32 %v1562, %v1571
        %1573 = vst [vmem:[%s535] sm:$0x1] %v1572
        %v1574 = vld [vmem:[%s538] sm:$0x1]
        %v1575 = vmul.f32 %v1532, %v1532
        %v1576 = vmul.f32 %v1533, %v1533
        %v1577 = vmul.f32 %v1534, %v1534
        %v1578 = vmul.f32 %v1535, %v1535
        %v1579 = vadd.f32 %v1575, %v1576
        %v1580 = vadd.f32 %v1579, %v1577
        %v1581 = vadd.f32 %v1580, %v1578
        %v1582 = vrot.slane %v1581, 4
        %v1583 = vadd.f32 %v1581, %v1582
        %v1584 = vrot.slane %v1583, 2
        %v1585 = vadd.f32 %v1583, %v1584
        %v1586 = vrot.slane %v1585, 1
        %v1587 = vadd.f32 %v1585, %v1586
        %v1588 = vadd.f32 %v1574, %v1587
        %1589 = vst [vmem:[%s538] sm:$0x1] %v1588
        %s1590 = smul.u32 4, %s22
        %p1591 = scmp.lt.s32.totalorder %s21, 1
        %s1592 = scalar_select %p1591, %s21, 1
        %p1593 = scmp.lt.s32.totalorder %s1590, 7
        %s1594 = scalar_select %p1593, %s1590, 7
        %s1595 = smul.addr %s1592, 8
        %s1596 = sadd.s32 %s1594, %s1595
        %s1597 = smul.addr %s1596, 4
        %s1598 = scalar_lea.vmem %s3, %s1597
        %p1599 = scmp.lt.s32.totalorder %s21, 1
        %s1600 = scalar_select %p1599, %s21, 1
        %s1601 = scalar_lea.vmem %s4, %s1600
        %p1602 = scmp.lt.s32.totalorder %s21, 1
        %s1603 = scalar_select %p1602, %s21, 1
        %s1604 = scalar_lea.vmem %s5, %s1603
        // Predicated region
        $region119: #{sampler_forward.2} parent=105 // pred_check
          %p1605 = pneg %p126
        $region120: #{sampler_forward.2} parent=105 // pred_check_branch
          %1607 = sbr.rel (%p1605) target = $region122
        $region121: #{sampler_forward.2} parent=105 // pred_region
          %s1608 = smul.u32 4, %s22
        $region122: #{sampler_forward.2} parent=105 // pred_fallthru
          _
        // Predicated region
        $region123: #{sampler_forward.2} parent=105 // pred_check
          %p1609 = pneg %p152
        $region124: #{sampler_forward.2} parent=105 // pred_check_branch
          %1611 = sbr.rel (%p1609) target = $region126
        $region125: #{sampler_forward.2} parent=105 // pred_region
          _
        $region126: #{sampler_forward.2} parent=105 // pred_fallthru
          _
        // Predicated region
        $region127: #{sampler_forward.2} parent=105 // pred_check
          %p1612 = pneg %p178
        $region128: #{sampler_forward.2} parent=105 // pred_check_branch
          %1614 = sbr.rel (%p1612) target = $region130
        $region129: #{sampler_forward.2} parent=105 // pred_region
          _
        $region130: #{sampler_forward.2} parent=105 // pred_fallthru
          _
      $region106: #{sampler_forward.2} parent=5 // pred_fallthru
        _
      %p1615 = scmp.le.s32.totalorder 2, %s12
      // Predicated region
      $region131: #{sampler_forward.2} parent=5 // pred_check
        %p1616 = pneg %p1615
      $region132: #{sampler_forward.2} parent=5 // pred_check_branch
        %1618 = sbr.rel (%p1616) target = $region134
      $region133: #{sampler_forward.2} parent=5 // pred_region
        %s1619 = ssub.s32 %s12, 2
        // Predicated region
        $region135: #{sampler_forward.2} parent=133 // pred_check
          %p1620 = pneg %p132
        $region136: #{sampler_forward.2} parent=133 // pred_check_branch
          %1622 = sbr.rel (%p1620) target = $region138
        $region137: #{sampler_forward.2} parent=133 // pred_region
          %s1623 = smul.u32 4, %s24
          %p1624 = scmp.lt.s32.totalorder %s23, 1
          %s1625 = scalar_select %p1624, %s23, 1
          %p1626 = scmp.lt.s32.totalorder %s1623, 7
          %s1627 = scalar_select %p1626, %s1623, 7
          %s1628 = smul.addr %s1625, 8
          %s1629 = sadd.s32 %s1627, %s1628
          %s1630 = smul.addr %s1629, 4
          %s1631 = scalar_lea.vmem %s3, %s1630
        $region138: #{sampler_forward.2} parent=133 // pred_fallthru
          _
        // Predicated region
        $region139: #{sampler_forward.2} parent=133 // pred_check
          %p1632 = pneg %p158
        $region140: #{sampler_forward.2} parent=133 // pred_check_branch
          %1634 = sbr.rel (%p1632) target = $region142
        $region141: #{sampler_forward.2} parent=133 // pred_region
          %p1635 = scmp.lt.s32.totalorder %s23, 1
          %s1636 = scalar_select %p1635, %s23, 1
          %s1637 = scalar_lea.vmem %s4, %s1636
        $region142: #{sampler_forward.2} parent=133 // pred_fallthru
          _
        // Predicated region
        $region143: #{sampler_forward.2} parent=133 // pred_check
          %p1638 = pneg %p184
        $region144: #{sampler_forward.2} parent=133 // pred_check_branch
          %1640 = sbr.rel (%p1638) target = $region146
        $region145: #{sampler_forward.2} parent=133 // pred_region
          %p1641 = scmp.lt.s32.totalorder %s23, 1
          %s1642 = scalar_select %p1641, %s23, 1
          %s1643 = scalar_lea.vmem %s5, %s1642
        $region146: #{sampler_forward.2} parent=133 // pred_fallthru
          _
      $region134: #{sampler_forward.2} parent=5 // pred_fallthru
        _
    $region6: #{sampler_forward.2} parent=1 // loop_footer
      %s16 = sadd.s32 1, %s12
    $region7: #{sampler_forward.2} parent=1 // loop_footer_branch
      %11 = sbr.rel target = $region3
    $region8: #{sampler_forward.2} parent=1 // loop_exit
      _

</llo_original>
